<compile_context>
chip_gen: v5e
topology: v5e:2x2
jax: 0.10.0
libtpu: 0.0.40
codegen_flags: <defaults>
</compile_context>

<pallas_src>
import jax
import jax.numpy as jnp
from jax.experimental import pallas as pl
from jax.experimental.pallas import tpu as pltpu


def _round_up(x: int, m: int) -> int:
    return ((x + m - 1) // m) * m


def _make_kernel(n_layers: int, seq_len: int, hidden: int, b_tile: int):
    """Build the Pallas kernel body for fixed (L, T, H, Bt)."""
    L, T, H, Bt = n_layers, seq_len, hidden, b_tile

    def kernel(proj_ref, w_ref, b_ref, wfc_ref, bfc_ref, out_ref):
        # proj_ref: (T, Bt, H)    layer-0 pre-activation (x @ w_ih0.T + b0), time-major
        # w_ref:    (2L-1, H, H)  [w_hh0.T, w_ih1.T, w_hh1.T, w_ih2.T, w_hh2.T, ...]
        # b_ref:    (L, H)        pre-summed b_ih + b_hh per layer (row 0 unused: folded in proj0)
        # wfc_ref:  (1, H)        fc weight
        # bfc_ref:  (1, 1) SMEM   fc bias scalar
        # out_ref:  (Bt, 1)

        # Hoisted per-layer weights / broadcast biases (outside the time loop).
        w_hh = [w_ref[0]] + [w_ref[2 * l] for l in range(1, L)]          # (H, H) each
        w_ih = [None] + [w_ref[2 * l - 1] for l in range(1, L)]          # (H, H) each, l > 0
        bias_b = [None] + [jnp.broadcast_to(b_ref[l:l + 1, :], (Bt, H))
                           for l in range(1, L)]                          # (Bt, H) each, l > 0

        # ---- Time recurrence (zero initial hidden state), fully unrolled ----
        h = [jnp.zeros((Bt, H), jnp.float32) for _ in range(L)]
        for t in range(T):
            # Layer 0: only the recurrent dot is on the critical path.
            h[0] = jnp.tanh(
                proj_ref[t]
                + jnp.dot(h[0], w_hh[0], preferred_element_type=jnp.float32))
            # Layers l > 0: two independent dots (no concat); the recurrent dot's
            # operand h[l](t-1) is ready before h[l-1](t), so it can overlap.
            for l in range(1, L):
                rec = jnp.dot(h[l], w_hh[l], preferred_element_type=jnp.float32)
                inp = jnp.dot(h[l - 1], w_ih[l], preferred_element_type=jnp.float32)
                h[l] = jnp.tanh(inp + rec + bias_b[l])

        # ---- FC head: VPU multiply + lane reduction (N=1, keep off the MXU) ----
        logits = (jnp.sum(h[-1] * wfc_ref[...], axis=-1, keepdims=True)
                  + bfc_ref[0, 0])
        out_ref[...] = jax.nn.sigmoid(logits)

    return kernel


def rnn_chooser_forward(last_action, last_reward, params, *, n_layers):
    """Pallas forward pass. last_action/last_reward: (B, T) float32. Returns (B, 1)."""
    B, T = last_action.shape
    H = params["w_hh"][0].shape[0]
    L = n_layers

    # ---- Layer-0 input projection + bias fold in plain XLA (two broadcast FMAs) ----
    w_ih0 = params["w_ih"][0].astype(jnp.float32)                 # (H, 2)
    b0 = (params["b_ih"][0] + params["b_hh"][0]).astype(jnp.float32)
    proj0 = (last_action.astype(jnp.float32)[..., None] * w_ih0[:, 0]
             + last_reward.astype(jnp.float32)[..., None] * w_ih0[:, 1]
             + b0)                                                # (B, T, H)
    proj0 = jnp.transpose(proj0, (1, 0, 2))                       # (T, B, H) time-major

    # ---- Pad batch to a sublane-aligned tile; grid over batch tiles ----
    b_tile = min(_round_up(B, 8), 128)
    B_pad = _round_up(B, b_tile)
    if B_pad != B:
        proj0 = jnp.pad(proj0, ((0, 0), (0, B_pad - B), (0, 0)))
    grid = (B_pad // b_tile,)

    # ---- Weight slab (2L-1, H, H): [w_hh0.T, w_ih1.T, w_hh1.T, ...] ----
    w_list = [params["w_hh"][0].T.astype(jnp.float32)]
    for l in range(1, L):
        w_list.append(params["w_ih"][l].T.astype(jnp.float32))
        w_list.append(params["w_hh"][l].T.astype(jnp.float32))
    w_slab = jnp.stack(w_list, axis=0)                            # (2L-1, H, H)

    # ---- Pre-summed biases (L, H); row 0 already folded into proj0 ----
    b_slab = jnp.stack(
        [params["b_ih"][l] + params["b_hh"][l] for l in range(L)],
        axis=0).astype(jnp.float32)

    w_fc = params["w_fc"].astype(jnp.float32)                     # (1, H)
    b_fc = params["b_fc"].reshape(1, 1).astype(jnp.float32)       # (1, 1) -> SMEM scalar

    n_w = 2 * L - 1
    out = pl.pallas_call(
        _make_kernel(L, T, H, b_tile),
        out_shape=jax.ShapeDtypeStruct((B_pad, 1), jnp.float32),
        grid=grid,
        in_specs=[
            pl.BlockSpec((T, b_tile, H), lambda i: (0, i, 0)),
            pl.BlockSpec((n_w, H, H), lambda i: (0, 0, 0)),
            pl.BlockSpec((L, H), lambda i: (0, 0)),
            pl.BlockSpec((1, H), lambda i: (0, 0)),
            pl.BlockSpec((1, 1), lambda i: (0, 0),
                         memory_space=pltpu.MemorySpace.SMEM),
        ],
        out_specs=pl.BlockSpec((b_tile, 1), lambda i: (i, 0)),
        compiler_params=pltpu.CompilerParams(
            dimension_semantics=("parallel",)),
    )(proj0, w_slab, b_slab, w_fc, b_fc)
    return out[:B]


def init_params(key, hidden_size, n_layers):
    """Xavier-uniform weights, zero biases (matches _init_weights_xavier_uniform)."""
    def xavier(key, shape):
        fan_out, fan_in = shape  # torch linear/rnn weights are (out, in)
        bound = jnp.sqrt(6.0 / (fan_in + fan_out))
        return jax.random.uniform(key, shape, jnp.float32, -bound, bound)

    keys = jax.random.split(key, 2 * n_layers + 1)
    params = {"w_ih": [], "w_hh": [], "b_ih": [], "b_hh": []}
    for l in range(n_layers):
        in_dim = 2 if l == 0 else hidden_size
        params["w_ih"].append(xavier(keys[2 * l], (hidden_size, in_dim)))
        params["w_hh"].append(xavier(keys[2 * l + 1], (hidden_size, hidden_size)))
        params["b_ih"].append(jnp.zeros((hidden_size,), jnp.float32))
        params["b_hh"].append(jnp.zeros((hidden_size,), jnp.float32))
    params["w_fc"] = xavier(keys[-1], (1, hidden_size))
    params["b_fc"] = jnp.zeros((1,), jnp.float32)
    return params


def reference_forward(last_action, last_reward, params, *, n_layers):
    """Pure-JAX reference mirroring torch.nn.RNN (tanh) + Linear + Sigmoid."""
    x = jnp.stack([last_action, last_reward], axis=2).astype(jnp.float32)
    B, T, _ = x.shape
    H = params["w_hh"][0].shape[0]
    h = [jnp.zeros((B, H), jnp.float32) for _ in range(n_layers)]
    for t in range(T):
        inp = x[:, t, :]
        for l in range(n_layers):
            pre = (inp @ params["w_ih"][l].T + params["b_ih"][l]
                   + h[l] @ params["w_hh"][l].T + params["b_hh"][l])
            h[l] = jnp.tanh(pre)
            inp = h[l]
    logits = h[-1] @ params["w_fc"].T + params["b_fc"]
    return jax.nn.sigmoid(logits)


if __name__ == "__main__":
    HIDDEN = 32
    N_LAYERS = 2
    T = 8

    key = jax.random.PRNGKey(0)
    k_params, k_act, k_rew = jax.random.split(key, 3)
    params = init_params(k_params, HIDDEN, N_LAYERS)

    # Two batch sizes: sublane/lane-full B=128 (the review's throughput target)
    # and an odd B=5 to exercise the batch-padding path.
    for B in (128, 5):
        ka, kr = jax.random.split(jax.random.fold_in(k_act, B), 2)
        last_action = jax.random.bernoulli(ka, 0.5, (B, T)).astype(jnp.float32)
        last_reward = jax.random.uniform(kr, (B, T), jnp.float32)

        out = rnn_chooser_forward(last_action, last_reward, params,
                                  n_layers=N_LAYERS)
        out = jax.block_until_ready(out)

        ref = reference_forward(last_action, last_reward, params,
                                n_layers=N_LAYERS)
        assert out.shape == (B, 1)
        assert jnp.allclose(out, ref, atol=1e-5, rtol=1e-5), (B, out, ref)

    print("KERNEL_OK")
</pallas_src>

<mosaic_0001>
module attributes {stable_mosaic.version = 11 : i64} {
  func.func @kernel(%arg0: i32, %arg1: memref<8x128x32xf32, #tpu.memory_space<vmem>>, %arg2: memref<3x32x32xf32, #tpu.memory_space<vmem>>, %arg3: memref<2x32xf32, #tpu.memory_space<vmem>>, %arg4: memref<1x32xf32, #tpu.memory_space<vmem>>, %arg5: memref<1x1xf32, #tpu.memory_space<smem>>, %arg6: memref<128x1xf32, #tpu.memory_space<vmem>>) attributes {dimension_semantics = [#tpu.dimension_semantics<parallel>], iteration_bounds = array<i64: 1>, scalar_prefetch = 0 : i64, scratch_operands = 0 : i64, tpu.core_type = #tpu.core_type<tc>, window_params = [{transform_indices = @transform_0, window_bounds = array<i64: 8, 128, 32>}, {pipeline_mode = #tpu.pipeline_mode<synchronous>, transform_indices = @transform_1, window_bounds = array<i64: 3, 32, 32>}, {pipeline_mode = #tpu.pipeline_mode<synchronous>, transform_indices = @transform_2, window_bounds = array<i64: 2, 32>}, {pipeline_mode = #tpu.pipeline_mode<synchronous>, transform_indices = @transform_3, window_bounds = array<i64: 1, 32>}, {transform_indices = @transform_4, window_bounds = array<i64: 1, 1>}, {transform_indices = @transform_5, window_bounds = array<i64: 128, 1>}]} {
    %c0 = arith.constant 0 : index
    %c0_0 = arith.constant 0 : index
    %c0_1 = arith.constant 0 : index
    %0 = vector.load %arg2[%c0, %c0_0, %c0_1] : memref<3x32x32xf32, #tpu.memory_space<vmem>>, vector<1x32x32xf32>
    %1 = vector.shape_cast %0 : vector<1x32x32xf32> to vector<32x32xf32>
    %c2 = arith.constant 2 : index
    %c0_2 = arith.constant 0 : index
    %c0_3 = arith.constant 0 : index
    %2 = vector.load %arg2[%c2, %c0_2, %c0_3] : memref<3x32x32xf32, #tpu.memory_space<vmem>>, vector<1x32x32xf32>
    %3 = vector.shape_cast %2 : vector<1x32x32xf32> to vector<32x32xf32>
    %c1 = arith.constant 1 : index
    %c0_4 = arith.constant 0 : index
    %c0_5 = arith.constant 0 : index
    %4 = vector.load %arg2[%c1, %c0_4, %c0_5] : memref<3x32x32xf32, #tpu.memory_space<vmem>>, vector<1x32x32xf32>
    %5 = vector.shape_cast %4 : vector<1x32x32xf32> to vector<32x32xf32>
    %c1_6 = arith.constant 1 : index
    %c0_7 = arith.constant 0 : index
    %6 = vector.load %arg3[%c1_6, %c0_7] : memref<2x32xf32, #tpu.memory_space<vmem>>, vector<1x32xf32>
    %7 = vector.shape_cast %6 : vector<1x32xf32> to vector<1x32xf32>
    %8 = vector.broadcast %7 : vector<1x32xf32> to vector<128x32xf32>
    %cst = arith.constant 0.000000e+00 : f32
    %9 = vector.broadcast %cst : f32 to vector<128x32xf32>
    %cst_8 = arith.constant 0.000000e+00 : f32
    %10 = vector.broadcast %cst_8 : f32 to vector<128x32xf32>
    %c0_9 = arith.constant 0 : index
    %c0_10 = arith.constant 0 : index
    %c0_11 = arith.constant 0 : index
    %11 = vector.load %arg1[%c0_9, %c0_10, %c0_11] : memref<8x128x32xf32, #tpu.memory_space<vmem>>, vector<1x128x32xf32>
    %12 = vector.shape_cast %11 : vector<1x128x32xf32> to vector<128x32xf32>
    %cst_12 = arith.constant dense<0.000000e+00> : vector<128x32xf32>
    %13 = tpu.matmul %9, %1, %cst_12 {dimension_numbers = #tpu.dot_dimension_numbers<[1], [0], [0], [1], [0, 0, 1, 1], [], []>} : vector<128x32xf32>, vector<32x32xf32>, vector<128x32xf32> -> vector<128x32xf32>
    %14 = arith.addf %12, %13 : vector<128x32xf32>
    %15 = math.tanh %14 : vector<128x32xf32>
    %cst_13 = arith.constant dense<0.000000e+00> : vector<128x32xf32>
    %16 = tpu.matmul %10, %3, %cst_13 {dimension_numbers = #tpu.dot_dimension_numbers<[1], [0], [0], [1], [0, 0, 1, 1], [], []>} : vector<128x32xf32>, vector<32x32xf32>, vector<128x32xf32> -> vector<128x32xf32>
    %cst_14 = arith.constant dense<0.000000e+00> : vector<128x32xf32>
    %17 = tpu.matmul %15, %5, %cst_14 {dimension_numbers = #tpu.dot_dimension_numbers<[1], [0], [0], [1], [0, 0, 1, 1], [], []>} : vector<128x32xf32>, vector<32x32xf32>, vector<128x32xf32> -> vector<128x32xf32>
    %18 = arith.addf %17, %16 : vector<128x32xf32>
    %19 = arith.addf %18, %8 : vector<128x32xf32>
    %20 = math.tanh %19 : vector<128x32xf32>
    %c1_15 = arith.constant 1 : index
    %c0_16 = arith.constant 0 : index
    %c0_17 = arith.constant 0 : index
    %21 = vector.load %arg1[%c1_15, %c0_16, %c0_17] : memref<8x128x32xf32, #tpu.memory_space<vmem>>, vector<1x128x32xf32>
    %22 = vector.shape_cast %21 : vector<1x128x32xf32> to vector<128x32xf32>
    %cst_18 = arith.constant dense<0.000000e+00> : vector<128x32xf32>
    %23 = tpu.matmul %15, %1, %cst_18 {dimension_numbers = #tpu.dot_dimension_numbers<[1], [0], [0], [1], [0, 0, 1, 1], [], []>} : vector<128x32xf32>, vector<32x32xf32>, vector<128x32xf32> -> vector<128x32xf32>
    %24 = arith.addf %22, %23 : vector<128x32xf32>
    %25 = math.tanh %24 : vector<128x32xf32>
    %cst_19 = arith.constant dense<0.000000e+00> : vector<128x32xf32>
    %26 = tpu.matmul %20, %3, %cst_19 {dimension_numbers = #tpu.dot_dimension_numbers<[1], [0], [0], [1], [0, 0, 1, 1], [], []>} : vector<128x32xf32>, vector<32x32xf32>, vector<128x32xf32> -> vector<128x32xf32>
    %cst_20 = arith.constant dense<0.000000e+00> : vector<128x32xf32>
    %27 = tpu.matmul %25, %5, %cst_20 {dimension_numbers = #tpu.dot_dimension_numbers<[1], [0], [0], [1], [0, 0, 1, 1], [], []>} : vector<128x32xf32>, vector<32x32xf32>, vector<128x32xf32> -> vector<128x32xf32>
    %28 = arith.addf %27, %26 : vector<128x32xf32>
    %29 = arith.addf %28, %8 : vector<128x32xf32>
    %30 = math.tanh %29 : vector<128x32xf32>
    %c2_21 = arith.constant 2 : index
    %c0_22 = arith.constant 0 : index
    %c0_23 = arith.constant 0 : index
    %31 = vector.load %arg1[%c2_21, %c0_22, %c0_23] : memref<8x128x32xf32, #tpu.memory_space<vmem>>, vector<1x128x32xf32>
    %32 = vector.shape_cast %31 : vector<1x128x32xf32> to vector<128x32xf32>
    %cst_24 = arith.constant dense<0.000000e+00> : vector<128x32xf32>
    %33 = tpu.matmul %25, %1, %cst_24 {dimension_numbers = #tpu.dot_dimension_numbers<[1], [0], [0], [1], [0, 0, 1, 1], [], []>} : vector<128x32xf32>, vector<32x32xf32>, vector<128x32xf32> -> vector<128x32xf32>
    %34 = arith.addf %32, %33 : vector<128x32xf32>
    %35 = math.tanh %34 : vector<128x32xf32>
    %cst_25 = arith.constant dense<0.000000e+00> : vector<128x32xf32>
    %36 = tpu.matmul %30, %3, %cst_25 {dimension_numbers = #tpu.dot_dimension_numbers<[1], [0], [0], [1], [0, 0, 1, 1], [], []>} : vector<128x32xf32>, vector<32x32xf32>, vector<128x32xf32> -> vector<128x32xf32>
    %cst_26 = arith.constant dense<0.000000e+00> : vector<128x32xf32>
    %37 = tpu.matmul %35, %5, %cst_26 {dimension_numbers = #tpu.dot_dimension_numbers<[1], [0], [0], [1], [0, 0, 1, 1], [], []>} : vector<128x32xf32>, vector<32x32xf32>, vector<128x32xf32> -> vector<128x32xf32>
    %38 = arith.addf %37, %36 : vector<128x32xf32>
    %39 = arith.addf %38, %8 : vector<128x32xf32>
    %40 = math.tanh %39 : vector<128x32xf32>
    %c3 = arith.constant 3 : index
    %c0_27 = arith.constant 0 : index
    %c0_28 = arith.constant 0 : index
    %41 = vector.load %arg1[%c3, %c0_27, %c0_28] : memref<8x128x32xf32, #tpu.memory_space<vmem>>, vector<1x128x32xf32>
    %42 = vector.shape_cast %41 : vector<1x128x32xf32> to vector<128x32xf32>
    %cst_29 = arith.constant dense<0.000000e+00> : vector<128x32xf32>
    %43 = tpu.matmul %35, %1, %cst_29 {dimension_numbers = #tpu.dot_dimension_numbers<[1], [0], [0], [1], [0, 0, 1, 1], [], []>} : vector<128x32xf32>, vector<32x32xf32>, vector<128x32xf32> -> vector<128x32xf32>
    %44 = arith.addf %42, %43 : vector<128x32xf32>
    %45 = math.tanh %44 : vector<128x32xf32>
    %cst_30 = arith.constant dense<0.000000e+00> : vector<128x32xf32>
    %46 = tpu.matmul %40, %3, %cst_30 {dimension_numbers = #tpu.dot_dimension_numbers<[1], [0], [0], [1], [0, 0, 1, 1], [], []>} : vector<128x32xf32>, vector<32x32xf32>, vector<128x32xf32> -> vector<128x32xf32>
    %cst_31 = arith.constant dense<0.000000e+00> : vector<128x32xf32>
    %47 = tpu.matmul %45, %5, %cst_31 {dimension_numbers = #tpu.dot_dimension_numbers<[1], [0], [0], [1], [0, 0, 1, 1], [], []>} : vector<128x32xf32>, vector<32x32xf32>, vector<128x32xf32> -> vector<128x32xf32>
    %48 = arith.addf %47, %46 : vector<128x32xf32>
    %49 = arith.addf %48, %8 : vector<128x32xf32>
    %50 = math.tanh %49 : vector<128x32xf32>
    %c4 = arith.constant 4 : index
    %c0_32 = arith.constant 0 : index
    %c0_33 = arith.constant 0 : index
    %51 = vector.load %arg1[%c4, %c0_32, %c0_33] : memref<8x128x32xf32, #tpu.memory_space<vmem>>, vector<1x128x32xf32>
    %52 = vector.shape_cast %51 : vector<1x128x32xf32> to vector<128x32xf32>
    %cst_34 = arith.constant dense<0.000000e+00> : vector<128x32xf32>
    %53 = tpu.matmul %45, %1, %cst_34 {dimension_numbers = #tpu.dot_dimension_numbers<[1], [0], [0], [1], [0, 0, 1, 1], [], []>} : vector<128x32xf32>, vector<32x32xf32>, vector<128x32xf32> -> vector<128x32xf32>
    %54 = arith.addf %52, %53 : vector<128x32xf32>
    %55 = math.tanh %54 : vector<128x32xf32>
    %cst_35 = arith.constant dense<0.000000e+00> : vector<128x32xf32>
    %56 = tpu.matmul %50, %3, %cst_35 {dimension_numbers = #tpu.dot_dimension_numbers<[1], [0], [0], [1], [0, 0, 1, 1], [], []>} : vector<128x32xf32>, vector<32x32xf32>, vector<128x32xf32> -> vector<128x32xf32>
    %cst_36 = arith.constant dense<0.000000e+00> : vector<128x32xf32>
    %57 = tpu.matmul %55, %5, %cst_36 {dimension_numbers = #tpu.dot_dimension_numbers<[1], [0], [0], [1], [0, 0, 1, 1], [], []>} : vector<128x32xf32>, vector<32x32xf32>, vector<128x32xf32> -> vector<128x32xf32>
    %58 = arith.addf %57, %56 : vector<128x32xf32>
    %59 = arith.addf %58, %8 : vector<128x32xf32>
    %60 = math.tanh %59 : vector<128x32xf32>
    %c5 = arith.constant 5 : index
    %c0_37 = arith.constant 0 : index
    %c0_38 = arith.constant 0 : index
    %61 = vector.load %arg1[%c5, %c0_37, %c0_38] : memref<8x128x32xf32, #tpu.memory_space<vmem>>, vector<1x128x32xf32>
    %62 = vector.shape_cast %61 : vector<1x128x32xf32> to vector<128x32xf32>
    %cst_39 = arith.constant dense<0.000000e+00> : vector<128x32xf32>
    %63 = tpu.matmul %55, %1, %cst_39 {dimension_numbers = #tpu.dot_dimension_numbers<[1], [0], [0], [1], [0, 0, 1, 1], [], []>} : vector<128x32xf32>, vector<32x32xf32>, vector<128x32xf32> -> vector<128x32xf32>
    %64 = arith.addf %62, %63 : vector<128x32xf32>
    %65 = math.tanh %64 : vector<128x32xf32>
    %cst_40 = arith.constant dense<0.000000e+00> : vector<128x32xf32>
    %66 = tpu.matmul %60, %3, %cst_40 {dimension_numbers = #tpu.dot_dimension_numbers<[1], [0], [0], [1], [0, 0, 1, 1], [], []>} : vector<128x32xf32>, vector<32x32xf32>, vector<128x32xf32> -> vector<128x32xf32>
    %cst_41 = arith.constant dense<0.000000e+00> : vector<128x32xf32>
    %67 = tpu.matmul %65, %5, %cst_41 {dimension_numbers = #tpu.dot_dimension_numbers<[1], [0], [0], [1], [0, 0, 1, 1], [], []>} : vector<128x32xf32>, vector<32x32xf32>, vector<128x32xf32> -> vector<128x32xf32>
    %68 = arith.addf %67, %66 : vector<128x32xf32>
    %69 = arith.addf %68, %8 : vector<128x32xf32>
    %70 = math.tanh %69 : vector<128x32xf32>
    %c6 = arith.constant 6 : index
    %c0_42 = arith.constant 0 : index
    %c0_43 = arith.constant 0 : index
    %71 = vector.load %arg1[%c6, %c0_42, %c0_43] : memref<8x128x32xf32, #tpu.memory_space<vmem>>, vector<1x128x32xf32>
    %72 = vector.shape_cast %71 : vector<1x128x32xf32> to vector<128x32xf32>
    %cst_44 = arith.constant dense<0.000000e+00> : vector<128x32xf32>
    %73 = tpu.matmul %65, %1, %cst_44 {dimension_numbers = #tpu.dot_dimension_numbers<[1], [0], [0], [1], [0, 0, 1, 1], [], []>} : vector<128x32xf32>, vector<32x32xf32>, vector<128x32xf32> -> vector<128x32xf32>
    %74 = arith.addf %72, %73 : vector<128x32xf32>
    %75 = math.tanh %74 : vector<128x32xf32>
    %cst_45 = arith.constant dense<0.000000e+00> : vector<128x32xf32>
    %76 = tpu.matmul %70, %3, %cst_45 {dimension_numbers = #tpu.dot_dimension_numbers<[1], [0], [0], [1], [0, 0, 1, 1], [], []>} : vector<128x32xf32>, vector<32x32xf32>, vector<128x32xf32> -> vector<128x32xf32>
    %cst_46 = arith.constant dense<0.000000e+00> : vector<128x32xf32>
    %77 = tpu.matmul %75, %5, %cst_46 {dimension_numbers = #tpu.dot_dimension_numbers<[1], [0], [0], [1], [0, 0, 1, 1], [], []>} : vector<128x32xf32>, vector<32x32xf32>, vector<128x32xf32> -> vector<128x32xf32>
    %78 = arith.addf %77, %76 : vector<128x32xf32>
    %79 = arith.addf %78, %8 : vector<128x32xf32>
    %80 = math.tanh %79 : vector<128x32xf32>
    %c7 = arith.constant 7 : index
    %c0_47 = arith.constant 0 : index
    %c0_48 = arith.constant 0 : index
    %81 = vector.load %arg1[%c7, %c0_47, %c0_48] : memref<8x128x32xf32, #tpu.memory_space<vmem>>, vector<1x128x32xf32>
    %82 = vector.shape_cast %81 : vector<1x128x32xf32> to vector<128x32xf32>
    %cst_49 = arith.constant dense<0.000000e+00> : vector<128x32xf32>
    %83 = tpu.matmul %75, %1, %cst_49 {dimension_numbers = #tpu.dot_dimension_numbers<[1], [0], [0], [1], [0, 0, 1, 1], [], []>} : vector<128x32xf32>, vector<32x32xf32>, vector<128x32xf32> -> vector<128x32xf32>
    %84 = arith.addf %82, %83 : vector<128x32xf32>
    %85 = math.tanh %84 : vector<128x32xf32>
    %cst_50 = arith.constant dense<0.000000e+00> : vector<128x32xf32>
    %86 = tpu.matmul %80, %3, %cst_50 {dimension_numbers = #tpu.dot_dimension_numbers<[1], [0], [0], [1], [0, 0, 1, 1], [], []>} : vector<128x32xf32>, vector<32x32xf32>, vector<128x32xf32> -> vector<128x32xf32>
    %cst_51 = arith.constant dense<0.000000e+00> : vector<128x32xf32>
    %87 = tpu.matmul %85, %5, %cst_51 {dimension_numbers = #tpu.dot_dimension_numbers<[1], [0], [0], [1], [0, 0, 1, 1], [], []>} : vector<128x32xf32>, vector<32x32xf32>, vector<128x32xf32> -> vector<128x32xf32>
    %88 = arith.addf %87, %86 : vector<128x32xf32>
    %89 = arith.addf %88, %8 : vector<128x32xf32>
    %90 = math.tanh %89 : vector<128x32xf32>
    %c0_52 = arith.constant 0 : index
    %c0_53 = arith.constant 0 : index
    %91 = vector.load %arg4[%c0_52, %c0_53] : memref<1x32xf32, #tpu.memory_space<vmem>>, vector<1x32xf32>
    %92 = vector.broadcast %91 : vector<1x32xf32> to vector<128x32xf32>
    %93 = arith.mulf %90, %92 : vector<128x32xf32>
    %cst_54 = arith.constant dense<0.000000e+00> : vector<128xf32>
    %94 = vector.multi_reduction <add>, %93, %cst_54 [1] : vector<128x32xf32> to vector<128xf32>
    %95 = vector.shape_cast %94 : vector<128xf32> to vector<128x1xf32>
    %c0_55 = arith.constant 0 : index
    %c0_56 = arith.constant 0 : index
    %96 = memref.load %arg5[%c0_55, %c0_56] : memref<1x1xf32, #tpu.memory_space<smem>>
    %97 = vector.broadcast %96 : f32 to vector<128x1xf32>
    %98 = arith.addf %95, %97 : vector<128x1xf32>
    %99 = arith.negf %98 : vector<128x1xf32>
    %100 = math.exp %99 : vector<128x1xf32>
    %cst_57 = arith.constant 1.000000e+00 : f32
    %101 = vector.broadcast %cst_57 : f32 to vector<128x1xf32>
    %102 = arith.addf %101, %100 : vector<128x1xf32>
    %103 = arith.divf %101, %102 : vector<128x1xf32>
    %c0_58 = arith.constant 0 : index
    %c0_59 = arith.constant 0 : index
    %104 = vector.load %arg6[%c0_58, %c0_59] : memref<128x1xf32, #tpu.memory_space<vmem>>, vector<128x1xf32>
    tpu.vector_store %arg6[%c0_58, %c0_59], %103 {strides = array<i32>} : memref<128x1xf32, #tpu.memory_space<vmem>>, vector<128x1xf32>,
    return
  }
  func.func @transform_0(%arg0: i32) -> (i32, i32, i32) {
    %c0_i32 = arith.constant 0 : i32
    %c0_i32_0 = arith.constant 0 : i32
    %c0_i32_1 = arith.constant 0 : i32
    return %c0_i32, %arg0, %c0_i32_0 : i32, i32, i32
  }
  func.func @transform_1(%arg0: i32) -> (i32, i32, i32) {
    %c0_i32 = arith.constant 0 : i32
    %c0_i32_0 = arith.constant 0 : i32
    %c0_i32_1 = arith.constant 0 : i32
    %c0_i32_2 = arith.constant 0 : i32
    return %c0_i32, %c0_i32_0, %c0_i32_1 : i32, i32, i32
  }
  func.func @transform_2(%arg0: i32) -> (i32, i32) {
    %c0_i32 = arith.constant 0 : i32
    %c0_i32_0 = arith.constant 0 : i32
    %c0_i32_1 = arith.constant 0 : i32
    return %c0_i32, %c0_i32_0 : i32, i32
  }
  func.func @transform_3(%arg0: i32) -> (i32, i32) {
    %c0_i32 = arith.constant 0 : i32
    %c0_i32_0 = arith.constant 0 : i32
    %c0_i32_1 = arith.constant 0 : i32
    return %c0_i32, %c0_i32_0 : i32, i32
  }
  func.func @transform_4(%arg0: i32) -> (i32, i32) {
    %c0_i32 = arith.constant 0 : i32
    %c0_i32_0 = arith.constant 0 : i32
    %c0_i32_1 = arith.constant 0 : i32
    return %c0_i32, %c0_i32_0 : i32, i32
  }
  func.func @transform_5(%arg0: i32) -> (i32, i32) {
    %c0_i32 = arith.constant 0 : i32
    %c0_i32_0 = arith.constant 0 : i32
    return %arg0, %c0_i32 : i32, i32
  }
}

</mosaic_0001>

<llo_original>
// kernel: tpu_custom_call.1
$region0: #{tpu_custom_call.1}
  #allocation0 [shape = 'u32[]', space=smem, size = 0x4, offset = 0x4, fixed_abs, tag = 'smem constant byte address 0x4 - core index']
  #allocation1 [shape = 'u32[72,128]{1,0:T(1,128)}', space=vmem, size = 0x9000, scoped, tag = 'internal scratch']
  #allocation2 [shape = 'f32[1,1]{1,0:T(1,128)S(6)}', space=smem, size = 0x200, scoped, tag = 'scoped memory for tpu_custom_call.1']
  %s0 = inlined_call_operand.vmem [shape: f32[8,128,32], index: 0, kind: input, shape index: {}]
  %s1 = inlined_call_operand.vmem [shape: f32[3,32,32], index: 1, kind: input, shape index: {}]
  %s2 = inlined_call_operand.vmem [shape: f32[2,32], index: 2, kind: input, shape index: {}]
  %s3 = inlined_call_operand.vmem [shape: f32[1,32], index: 3, kind: input, shape index: {}]
  %s4 = inlined_call_operand.<no memory space> [shape: f32[1,1], index: 4, kind: input, shape index: {}]
  %s5 = inlined_call_operand.vmem [shape: f32[128,1], index: 5, kind: output, shape index: {}]
  %s6 = sld [smem:[#allocation0]]
  $region30: #{tpu_custom_call.1} parent=0
    _
  %s8 = ssub.s32 1, %s6
  %s9 = scalar_select 0, %s8, %s6
  %10 = sst [smem:[#allocation2]] %s4
  // Predicated region
  $region2: #{tpu_custom_call.1} parent=0 // pred_check
    _
  $region3: #{tpu_custom_call.1} parent=0 // pred_check_branch
    %12 = sbr.rel (0) target = $region5
  $region4: #{tpu_custom_call.1} parent=0 // pred_region
    _
  $region5: #{tpu_custom_call.1} parent=0 // pred_fallthru
    _
  // Predicated region
  $region6: #{tpu_custom_call.1} parent=0 // pred_check
    _
  $region7: #{tpu_custom_call.1} parent=0 // pred_check_branch
    %14 = sbr.rel (0) target = $region9
  $region8: #{tpu_custom_call.1} parent=0 // pred_region
    _
  $region9: #{tpu_custom_call.1} parent=0 // pred_fallthru
    _
  // Predicated region
  $region10: #{tpu_custom_call.1} parent=0 // pred_check
    _
  $region11: #{tpu_custom_call.1} parent=0 // pred_check_branch
    %16 = sbr.rel (0) target = $region13
  $region12: #{tpu_custom_call.1} parent=0 // pred_region
    _
  $region13: #{tpu_custom_call.1} parent=0 // pred_fallthru
    _
  // Predicated region
  $region14: #{tpu_custom_call.1} parent=0 // pred_check
    _
  $region15: #{tpu_custom_call.1} parent=0 // pred_check_branch
    %18 = sbr.rel (0) target = $region17
  $region16: #{tpu_custom_call.1} parent=0 // pred_region
    _
  $region17: #{tpu_custom_call.1} parent=0 // pred_fallthru
    _
  // Predicated region
  $region18: #{tpu_custom_call.1} parent=0 // pred_check
    _
  $region19: #{tpu_custom_call.1} parent=0 // pred_check_branch
    %20 = sbr.rel (0) target = $region21
  $region20: #{tpu_custom_call.1} parent=0 // pred_region
    _
  $region21: #{tpu_custom_call.1} parent=0 // pred_fallthru
    _
  %v21 = vld [vmem:[%s1] sm:$0xff]
  %v22 = vld [vmem:[%s1 + $0x8] sm:$0xff]
  %v23 = vld [vmem:[%s1 + $0x10] sm:$0xff]
  %v24 = vld [vmem:[%s1 + $0x18] sm:$0xff]
  %s25 = scalar_lea.vmem %s1, 64
  %v26 = vld [vmem:[%s25] sm:$0xff]
  %v27 = vld [vmem:[%s25 + $0x8] sm:$0xff]
  %v28 = vld [vmem:[%s25 + $0x10] sm:$0xff]
  %v29 = vld [vmem:[%s25 + $0x18] sm:$0xff]
  %s30 = scalar_lea.vmem %s1, 32
  %v31 = vld [vmem:[%s30] sm:$0xff]
  %v32 = vld [vmem:[%s30 + $0x8] sm:$0xff]
  %v33 = vld [vmem:[%s30 + $0x10] sm:$0xff]
  %v34 = vld [vmem:[%s30 + $0x18] sm:$0xff]
  %v35 = vld [vmem:[%s2 + $0x1] sm:$0x1]
  %v36 = vperm.slane %v35, 0
  %v37 = vld [vmem:[%s0] sm:$0xff]
  %v38 = vld [vmem:[%s0 + $0x8] sm:$0xff]
  %v39 = vld [vmem:[%s0 + $0x10] sm:$0xff]
  %v40 = vld [vmem:[%s0 + $0x18] sm:$0xff]
  %v41 = vld [vmem:[%s0 + $0x20] sm:$0xff]
  %v42 = vld [vmem:[%s0 + $0x28] sm:$0xff]
  %v43 = vld [vmem:[%s0 + $0x30] sm:$0xff]
  %v44 = vld [vmem:[%s0 + $0x38] sm:$0xff]
  %v45 = vld [vmem:[%s0 + $0x40] sm:$0xff]
  %v46 = vld [vmem:[%s0 + $0x48] sm:$0xff]
  %v47 = vld [vmem:[%s0 + $0x50] sm:$0xff]
  %v48 = vld [vmem:[%s0 + $0x58] sm:$0xff]
  %v49 = vld [vmem:[%s0 + $0x60] sm:$0xff]
  %v50 = vld [vmem:[%s0 + $0x68] sm:$0xff]
  %v51 = vld [vmem:[%s0 + $0x70] sm:$0xff]
  %v52 = vld [vmem:[%s0 + $0x78] sm:$0xff]
  %vm53 = vcmask 261120
  %v55 = vsel %vm53, 0.0, 0
  %57 = vmatpush.msra.mxu0 0.0
  %58 = vmatpush.msra.mxu0 0.0
  %59 = vmatpush.msra.mxu0 0.0
  %60 = vmatpush.msra.mxu0 0.0
  %61 = vmatpush.msra.mxu0 0.0
  %62 = vmatpush.msra.mxu0 0.0
  %63 = vmatpush.msra.mxu0 0.0
  %64 = vmatpush.msra.mxu0 0.0
  %65 = vmatpush.msra.mxu0 0.0
  %66 = vmatpush.msra.mxu0 0.0
  %67 = vmatpush.msra.mxu0 0.0
  %68 = vmatpush.msra.mxu0 0.0
  %69 = vmatpush.msra.mxu0 %v24
  %70 = vmatpush.msra.mxu0 %v23
  %71 = vmatpush.msra.mxu0 %v22
  %72 = vmatpush.msra.mxu0 %v21
  %73 = vmatmul.f32.gmra.mxu0 %v55
  %v74 = vpop.f32.mrf.mxu0
  %v75 = vadd.f32 0.0, %v74
  %76 = vmatmul.f32.gmra.mxu0 %v55
  %v77 = vpop.f32.mrf.mxu0
  %v78 = vadd.f32 0.0, %v77
  %79 = vmatmul.f32.gmra.mxu0 %v55
  %v80 = vpop.f32.mrf.mxu0
  %v81 = vadd.f32 0.0, %v80
  %82 = vmatmul.f32.gmra.mxu0 %v55
  %v83 = vpop.f32.mrf.mxu0
  %v84 = vadd.f32 0.0, %v83
  %85 = vmatmul.f32.gmra.mxu0 %v55
  %v86 = vpop.f32.mrf.mxu0
  %v87 = vadd.f32 0.0, %v86
  %88 = vmatmul.f32.gmra.mxu0 %v55
  %v89 = vpop.f32.mrf.mxu0
  %v90 = vadd.f32 0.0, %v89
  %91 = vmatmul.f32.gmra.mxu0 %v55
  %v92 = vpop.f32.mrf.mxu0
  %v93 = vadd.f32 0.0, %v92
  %94 = vmatmul.f32.gmra.mxu0 %v55
  %v95 = vpop.f32.mrf.mxu0
  %v96 = vadd.f32 0.0, %v95
  %97 = vmatmul.f32.gmra.mxu0 %v55
  %v98 = vpop.f32.mrf.mxu0
  %v99 = vadd.f32 0.0, %v98
  %100 = vmatmul.f32.gmra.mxu0 %v55
  %v101 = vpop.f32.mrf.mxu0
  %v102 = vadd.f32 0.0, %v101
  %103 = vmatmul.f32.gmra.mxu0 %v55
  %v104 = vpop.f32.mrf.mxu0
  %v105 = vadd.f32 0.0, %v104
  %106 = vmatmul.f32.gmra.mxu0 %v55
  %v107 = vpop.f32.mrf.mxu0
  %v108 = vadd.f32 0.0, %v107
  %109 = vmatmul.f32.gmra.mxu0 %v55
  %v110 = vpop.f32.mrf.mxu0
  %v111 = vadd.f32 0.0, %v110
  %112 = vmatmul.f32.gmra.mxu0 %v55
  %v113 = vpop.f32.mrf.mxu0
  %v114 = vadd.f32 0.0, %v113
  %115 = vmatmul.f32.gmra.mxu0 %v55
  %v116 = vpop.f32.mrf.mxu0
  %v117 = vadd.f32 0.0, %v116
  %118 = vmatmul.f32.gmra.mxu0 %v55
  %v119 = vpop.f32.mrf.mxu0
  %v120 = vadd.f32 0.0, %v119
  %121 = vdwg.mxu0
  %v122 = vadd.f32 %v37, %v75
  %v123 = vadd.f32 %v38, %v78
  %v124 = vadd.f32 %v39, %v81
  %v125 = vadd.f32 %v40, %v84
  %v126 = vadd.f32 %v41, %v87
  %v127 = vadd.f32 %v42, %v90
  %v128 = vadd.f32 %v43, %v93
  %v129 = vadd.f32 %v44, %v96
  %v130 = vadd.f32 %v45, %v99
  %v131 = vadd.f32 %v46, %v102
  %v132 = vadd.f32 %v47, %v105
  %v133 = vadd.f32 %v48, %v108
  %v134 = vadd.f32 %v49, %v111
  %v135 = vadd.f32 %v50, %v114
  %v136 = vadd.f32 %v51, %v117
  %v137 = vadd.f32 %v52, %v120
  %v138 = vtanh.pop %v122
  %v139 = vtanh.pop %v123
  %v140 = vtanh.pop %v124
  %v141 = vtanh.pop %v125
  %v142 = vtanh.pop %v126
  %v143 = vtanh.pop %v127
  %v144 = vtanh.pop %v128
  %v145 = vtanh.pop %v129
  %v146 = vtanh.pop %v130
  %v147 = vtanh.pop %v131
  %v148 = vtanh.pop %v132
  %v149 = vtanh.pop %v133
  %v150 = vtanh.pop %v134
  %v151 = vtanh.pop %v135
  %v152 = vtanh.pop %v136
  %v153 = vtanh.pop %v137
  %154 = vmatpush.msra.mxu0 0.0
  %155 = vmatpush.msra.mxu0 0.0
  %156 = vmatpush.msra.mxu0 0.0
  %157 = vmatpush.msra.mxu0 0.0
  %158 = vmatpush.msra.mxu0 0.0
  %159 = vmatpush.msra.mxu0 0.0
  %160 = vmatpush.msra.mxu0 0.0
  %161 = vmatpush.msra.mxu0 0.0
  %162 = vmatpush.msra.mxu0 0.0
  %163 = vmatpush.msra.mxu0 0.0
  %164 = vmatpush.msra.mxu0 0.0
  %165 = vmatpush.msra.mxu0 0.0
  %166 = vmatpush.msra.mxu0 %v29
  %167 = vmatpush.msra.mxu0 %v28
  %168 = vmatpush.msra.mxu0 %v27
  %169 = vmatpush.msra.mxu0 %v26
  %170 = vmatmul.f32.gmra.mxu0 %v55
  %v171 = vpop.f32.mrf.mxu0
  %v172 = vadd.f32 0.0, %v171
  %173 = vmatmul.f32.gmra.mxu0 %v55
  %v174 = vpop.f32.mrf.mxu0
  %v175 = vadd.f32 0.0, %v174
  %176 = vmatmul.f32.gmra.mxu0 %v55
  %v177 = vpop.f32.mrf.mxu0
  %v178 = vadd.f32 0.0, %v177
  %179 = vmatmul.f32.gmra.mxu0 %v55
  %v180 = vpop.f32.mrf.mxu0
  %v181 = vadd.f32 0.0, %v180
  %182 = vmatmul.f32.gmra.mxu0 %v55
  %v183 = vpop.f32.mrf.mxu0
  %v184 = vadd.f32 0.0, %v183
  %185 = vmatmul.f32.gmra.mxu0 %v55
  %v186 = vpop.f32.mrf.mxu0
  %v187 = vadd.f32 0.0, %v186
  %188 = vmatmul.f32.gmra.mxu0 %v55
  %v189 = vpop.f32.mrf.mxu0
  %v190 = vadd.f32 0.0, %v189
  %191 = vmatmul.f32.gmra.mxu0 %v55
  %v192 = vpop.f32.mrf.mxu0
  %v193 = vadd.f32 0.0, %v192
  %194 = vmatmul.f32.gmra.mxu0 %v55
  %v195 = vpop.f32.mrf.mxu0
  %v196 = vadd.f32 0.0, %v195
  %197 = vmatmul.f32.gmra.mxu0 %v55
  %v198 = vpop.f32.mrf.mxu0
  %v199 = vadd.f32 0.0, %v198
  %200 = vmatmul.f32.gmra.mxu0 %v55
  %v201 = vpop.f32.mrf.mxu0
  %v202 = vadd.f32 0.0, %v201
  %203 = vmatmul.f32.gmra.mxu0 %v55
  %v204 = vpop.f32.mrf.mxu0
  %v205 = vadd.f32 0.0, %v204
  %206 = vmatmul.f32.gmra.mxu0 %v55
  %v207 = vpop.f32.mrf.mxu0
  %v208 = vadd.f32 0.0, %v207
  %209 = vmatmul.f32.gmra.mxu0 %v55
  %v210 = vpop.f32.mrf.mxu0
  %v211 = vadd.f32 0.0, %v210
  %212 = vmatmul.f32.gmra.mxu0 %v55
  %v213 = vpop.f32.mrf.mxu0
  %v214 = vadd.f32 0.0, %v213
  %215 = vmatmul.f32.gmra.mxu0 %v55
  %v216 = vpop.f32.mrf.mxu0
  %v217 = vadd.f32 0.0, %v216
  %218 = vdwg.mxu0
  %v220 = vsel %vm53, %v138, 0
  %v223 = vsel %vm53, %v139, 0
  %v226 = vsel %vm53, %v140, 0
  %v229 = vsel %vm53, %v141, 0
  %v232 = vsel %vm53, %v142, 0
  %v235 = vsel %vm53, %v143, 0
  %v238 = vsel %vm53, %v144, 0
  %v241 = vsel %vm53, %v145, 0
  %v244 = vsel %vm53, %v146, 0
  %v247 = vsel %vm53, %v147, 0
  %v250 = vsel %vm53, %v148, 0
  %v253 = vsel %vm53, %v149, 0
  %v256 = vsel %vm53, %v150, 0
  %v259 = vsel %vm53, %v151, 0
  %v262 = vsel %vm53, %v152, 0
  %v265 = vsel %vm53, %v153, 0
  %267 = vmatpush.msra.mxu0 0.0
  %268 = vmatpush.msra.mxu0 0.0
  %269 = vmatpush.msra.mxu0 0.0
  %270 = vmatpush.msra.mxu0 0.0
  %271 = vmatpush.msra.mxu0 0.0
  %272 = vmatpush.msra.mxu0 0.0
  %273 = vmatpush.msra.mxu0 0.0
  %274 = vmatpush.msra.mxu0 0.0
  %275 = vmatpush.msra.mxu0 0.0
  %276 = vmatpush.msra.mxu0 0.0
  %277 = vmatpush.msra.mxu0 0.0
  %278 = vmatpush.msra.mxu0 0.0
  %279 = vmatpush.msra.mxu0 %v34
  %280 = vmatpush.msra.mxu0 %v33
  %281 = vmatpush.msra.mxu0 %v32
  %282 = vmatpush.msra.mxu0 %v31
  %283 = vmatmul.f32.gmra.mxu0 %v220
  %v284 = vpop.f32.mrf.mxu0
  %v285 = vadd.f32 %v172, %v284
  %286 = vmatmul.f32.gmra.mxu0 %v223
  %v287 = vpop.f32.mrf.mxu0
  %v288 = vadd.f32 %v175, %v287
  %289 = vmatmul.f32.gmra.mxu0 %v226
  %v290 = vpop.f32.mrf.mxu0
  %v291 = vadd.f32 %v178, %v290
  %292 = vmatmul.f32.gmra.mxu0 %v229
  %v293 = vpop.f32.mrf.mxu0
  %v294 = vadd.f32 %v181, %v293
  %295 = vmatmul.f32.gmra.mxu0 %v232
  %v296 = vpop.f32.mrf.mxu0
  %v297 = vadd.f32 %v184, %v296
  %298 = vmatmul.f32.gmra.mxu0 %v235
  %v299 = vpop.f32.mrf.mxu0
  %v300 = vadd.f32 %v187, %v299
  %301 = vmatmul.f32.gmra.mxu0 %v238
  %v302 = vpop.f32.mrf.mxu0
  %v303 = vadd.f32 %v190, %v302
  %304 = vmatmul.f32.gmra.mxu0 %v241
  %v305 = vpop.f32.mrf.mxu0
  %v306 = vadd.f32 %v193, %v305
  %307 = vmatmul.f32.gmra.mxu0 %v244
  %v308 = vpop.f32.mrf.mxu0
  %v309 = vadd.f32 %v196, %v308
  %310 = vmatmul.f32.gmra.mxu0 %v247
  %v311 = vpop.f32.mrf.mxu0
  %v312 = vadd.f32 %v199, %v311
  %313 = vmatmul.f32.gmra.mxu0 %v250
  %v314 = vpop.f32.mrf.mxu0
  %v315 = vadd.f32 %v202, %v314
  %316 = vmatmul.f32.gmra.mxu0 %v253
  %v317 = vpop.f32.mrf.mxu0
  %v318 = vadd.f32 %v205, %v317
  %319 = vmatmul.f32.gmra.mxu0 %v256
  %v320 = vpop.f32.mrf.mxu0
  %v321 = vadd.f32 %v208, %v320
  %322 = vmatmul.f32.gmra.mxu0 %v259
  %v323 = vpop.f32.mrf.mxu0
  %v324 = vadd.f32 %v211, %v323
  %325 = vmatmul.f32.gmra.mxu0 %v262
  %v326 = vpop.f32.mrf.mxu0
  %v327 = vadd.f32 %v214, %v326
  %328 = vmatmul.f32.gmra.mxu0 %v265
  %v329 = vpop.f32.mrf.mxu0
  %v330 = vadd.f32 %v217, %v329
  %331 = vdwg.mxu0
  %v332 = vadd.f32 %v285, %v36
  %v333 = vadd.f32 %v288, %v36
  %v334 = vadd.f32 %v291, %v36
  %v335 = vadd.f32 %v294, %v36
  %v336 = vadd.f32 %v297, %v36
  %v337 = vadd.f32 %v300, %v36
  %v338 = vadd.f32 %v303, %v36
  %v339 = vadd.f32 %v306, %v36
  %v340 = vadd.f32 %v309, %v36
  %v341 = vadd.f32 %v312, %v36
  %v342 = vadd.f32 %v315, %v36
  %v343 = vadd.f32 %v318, %v36
  %v344 = vadd.f32 %v321, %v36
  %v345 = vadd.f32 %v324, %v36
  %v346 = vadd.f32 %v327, %v36
  %v347 = vadd.f32 %v330, %v36
  %v348 = vtanh.pop %v332
  %v349 = vtanh.pop %v333
  %v350 = vtanh.pop %v334
  %v351 = vtanh.pop %v335
  %v352 = vtanh.pop %v336
  %v353 = vtanh.pop %v337
  %v354 = vtanh.pop %v338
  %v355 = vtanh.pop %v339
  %v356 = vtanh.pop %v340
  %v357 = vtanh.pop %v341
  %v358 = vtanh.pop %v342
  %v359 = vtanh.pop %v343
  %v360 = vtanh.pop %v344
  %v361 = vtanh.pop %v345
  %v362 = vtanh.pop %v346
  %v363 = vtanh.pop %v347
  %s364 = scalar_lea.vmem %s0, 128
  %v365 = vld [vmem:[%s364] sm:$0xff]
  %v366 = vld [vmem:[%s364 + $0x8] sm:$0xff]
  %v367 = vld [vmem:[%s364 + $0x10] sm:$0xff]
  %v368 = vld [vmem:[%s364 + $0x18] sm:$0xff]
  %v369 = vld [vmem:[%s364 + $0x20] sm:$0xff]
  %v370 = vld [vmem:[%s364 + $0x28] sm:$0xff]
  %v371 = vld [vmem:[%s364 + $0x30] sm:$0xff]
  %v372 = vld [vmem:[%s364 + $0x38] sm:$0xff]
  %v373 = vld [vmem:[%s364 + $0x40] sm:$0xff]
  %v374 = vld [vmem:[%s364 + $0x48] sm:$0xff]
  %v375 = vld [vmem:[%s364 + $0x50] sm:$0xff]
  %v376 = vld [vmem:[%s364 + $0x58] sm:$0xff]
  %v377 = vld [vmem:[%s364 + $0x60] sm:$0xff]
  %v378 = vld [vmem:[%s364 + $0x68] sm:$0xff]
  %v379 = vld [vmem:[%s364 + $0x70] sm:$0xff]
  %v380 = vld [vmem:[%s364 + $0x78] sm:$0xff]
  %381 = vmatpush.msra.mxu0 0.0
  %382 = vmatpush.msra.mxu0 0.0
  %383 = vmatpush.msra.mxu0 0.0
  %384 = vmatpush.msra.mxu0 0.0
  %385 = vmatpush.msra.mxu0 0.0
  %386 = vmatpush.msra.mxu0 0.0
  %387 = vmatpush.msra.mxu0 0.0
  %388 = vmatpush.msra.mxu0 0.0
  %389 = vmatpush.msra.mxu0 0.0
  %390 = vmatpush.msra.mxu0 0.0
  %391 = vmatpush.msra.mxu0 0.0
  %392 = vmatpush.msra.mxu0 0.0
  %393 = vmatpush.msra.mxu0 %v24
  %394 = vmatpush.msra.mxu0 %v23
  %395 = vmatpush.msra.mxu0 %v22
  %396 = vmatpush.msra.mxu0 %v21
  %397 = vmatmul.f32.gmra.mxu0 %v220
  %v398 = vpop.f32.mrf.mxu0
  %v399 = vadd.f32 0.0, %v398
  %400 = vmatmul.f32.gmra.mxu0 %v223
  %v401 = vpop.f32.mrf.mxu0
  %v402 = vadd.f32 0.0, %v401
  %403 = vmatmul.f32.gmra.mxu0 %v226
  %v404 = vpop.f32.mrf.mxu0
  %v405 = vadd.f32 0.0, %v404
  %406 = vmatmul.f32.gmra.mxu0 %v229
  %v407 = vpop.f32.mrf.mxu0
  %v408 = vadd.f32 0.0, %v407
  %409 = vmatmul.f32.gmra.mxu0 %v232
  %v410 = vpop.f32.mrf.mxu0
  %v411 = vadd.f32 0.0, %v410
  %412 = vmatmul.f32.gmra.mxu0 %v235
  %v413 = vpop.f32.mrf.mxu0
  %v414 = vadd.f32 0.0, %v413
  %415 = vmatmul.f32.gmra.mxu0 %v238
  %v416 = vpop.f32.mrf.mxu0
  %v417 = vadd.f32 0.0, %v416
  %418 = vmatmul.f32.gmra.mxu0 %v241
  %v419 = vpop.f32.mrf.mxu0
  %v420 = vadd.f32 0.0, %v419
  %421 = vmatmul.f32.gmra.mxu0 %v244
  %v422 = vpop.f32.mrf.mxu0
  %v423 = vadd.f32 0.0, %v422
  %424 = vmatmul.f32.gmra.mxu0 %v247
  %v425 = vpop.f32.mrf.mxu0
  %v426 = vadd.f32 0.0, %v425
  %427 = vmatmul.f32.gmra.mxu0 %v250
  %v428 = vpop.f32.mrf.mxu0
  %v429 = vadd.f32 0.0, %v428
  %430 = vmatmul.f32.gmra.mxu0 %v253
  %v431 = vpop.f32.mrf.mxu0
  %v432 = vadd.f32 0.0, %v431
  %433 = vmatmul.f32.gmra.mxu0 %v256
  %v434 = vpop.f32.mrf.mxu0
  %v435 = vadd.f32 0.0, %v434
  %436 = vmatmul.f32.gmra.mxu0 %v259
  %v437 = vpop.f32.mrf.mxu0
  %v438 = vadd.f32 0.0, %v437
  %439 = vmatmul.f32.gmra.mxu0 %v262
  %v440 = vpop.f32.mrf.mxu0
  %v441 = vadd.f32 0.0, %v440
  %442 = vmatmul.f32.gmra.mxu0 %v265
  %v443 = vpop.f32.mrf.mxu0
  %v444 = vadd.f32 0.0, %v443
  %445 = vdwg.mxu0
  %v446 = vadd.f32 %v365, %v399
  %v447 = vadd.f32 %v366, %v402
  %v448 = vadd.f32 %v367, %v405
  %v449 = vadd.f32 %v368, %v408
  %v450 = vadd.f32 %v369, %v411
  %v451 = vadd.f32 %v370, %v414
  %v452 = vadd.f32 %v371, %v417
  %v453 = vadd.f32 %v372, %v420
  %v454 = vadd.f32 %v373, %v423
  %v455 = vadd.f32 %v374, %v426
  %v456 = vadd.f32 %v375, %v429
  %v457 = vadd.f32 %v376, %v432
  %v458 = vadd.f32 %v377, %v435
  %v459 = vadd.f32 %v378, %v438
  %v460 = vadd.f32 %v379, %v441
  %v461 = vadd.f32 %v380, %v444
  %v462 = vtanh.pop %v446
  %v463 = vtanh.pop %v447
  %v464 = vtanh.pop %v448
  %v465 = vtanh.pop %v449
  %v466 = vtanh.pop %v450
  %v467 = vtanh.pop %v451
  %v468 = vtanh.pop %v452
  %v469 = vtanh.pop %v453
  %v470 = vtanh.pop %v454
  %v471 = vtanh.pop %v455
  %v472 = vtanh.pop %v456
  %v473 = vtanh.pop %v457
  %v474 = vtanh.pop %v458
  %v475 = vtanh.pop %v459
  %v476 = vtanh.pop %v460
  %v477 = vtanh.pop %v461
  %v479 = vsel %vm53, %v348, 0
  %v482 = vsel %vm53, %v349, 0
  %v485 = vsel %vm53, %v350, 0
  %v488 = vsel %vm53, %v351, 0
  %v491 = vsel %vm53, %v352, 0
  %v494 = vsel %vm53, %v353, 0
  %v497 = vsel %vm53, %v354, 0
  %v500 = vsel %vm53, %v355, 0
  %v503 = vsel %vm53, %v356, 0
  %v506 = vsel %vm53, %v357, 0
  %v509 = vsel %vm53, %v358, 0
  %v512 = vsel %vm53, %v359, 0
  %v515 = vsel %vm53, %v360, 0
  %v518 = vsel %vm53, %v361, 0
  %v521 = vsel %vm53, %v362, 0
  %v524 = vsel %vm53, %v363, 0
  %526 = vmatpush.msra.mxu0 0.0
  %527 = vmatpush.msra.mxu0 0.0
  %528 = vmatpush.msra.mxu0 0.0
  %529 = vmatpush.msra.mxu0 0.0
  %530 = vmatpush.msra.mxu0 0.0
  %531 = vmatpush.msra.mxu0 0.0
  %532 = vmatpush.msra.mxu0 0.0
  %533 = vmatpush.msra.mxu0 0.0
  %534 = vmatpush.msra.mxu0 0.0
  %535 = vmatpush.msra.mxu0 0.0
  %536 = vmatpush.msra.mxu0 0.0
  %537 = vmatpush.msra.mxu0 0.0
  %538 = vmatpush.msra.mxu0 %v29
  %539 = vmatpush.msra.mxu0 %v28
  %540 = vmatpush.msra.mxu0 %v27
  %541 = vmatpush.msra.mxu0 %v26
  %542 = vmatmul.f32.gmra.mxu0 %v479
  %v543 = vpop.f32.mrf.mxu0
  %v544 = vadd.f32 0.0, %v543
  %545 = vmatmul.f32.gmra.mxu0 %v482
  %v546 = vpop.f32.mrf.mxu0
  %v547 = vadd.f32 0.0, %v546
  %548 = vmatmul.f32.gmra.mxu0 %v485
  %v549 = vpop.f32.mrf.mxu0
  %v550 = vadd.f32 0.0, %v549
  %551 = vmatmul.f32.gmra.mxu0 %v488
  %v552 = vpop.f32.mrf.mxu0
  %v553 = vadd.f32 0.0, %v552
  %554 = vmatmul.f32.gmra.mxu0 %v491
  %v555 = vpop.f32.mrf.mxu0
  %v556 = vadd.f32 0.0, %v555
  %557 = vmatmul.f32.gmra.mxu0 %v494
  %v558 = vpop.f32.mrf.mxu0
  %v559 = vadd.f32 0.0, %v558
  %560 = vmatmul.f32.gmra.mxu0 %v497
  %v561 = vpop.f32.mrf.mxu0
  %v562 = vadd.f32 0.0, %v561
  %563 = vmatmul.f32.gmra.mxu0 %v500
  %v564 = vpop.f32.mrf.mxu0
  %v565 = vadd.f32 0.0, %v564
  %566 = vmatmul.f32.gmra.mxu0 %v503
  %v567 = vpop.f32.mrf.mxu0
  %v568 = vadd.f32 0.0, %v567
  %569 = vmatmul.f32.gmra.mxu0 %v506
  %v570 = vpop.f32.mrf.mxu0
  %v571 = vadd.f32 0.0, %v570
  %572 = vmatmul.f32.gmra.mxu0 %v509
  %v573 = vpop.f32.mrf.mxu0
  %v574 = vadd.f32 0.0, %v573
  %575 = vmatmul.f32.gmra.mxu0 %v512
  %v576 = vpop.f32.mrf.mxu0
  %v577 = vadd.f32 0.0, %v576
  %578 = vmatmul.f32.gmra.mxu0 %v515
  %v579 = vpop.f32.mrf.mxu0
  %v580 = vadd.f32 0.0, %v579
  %581 = vmatmul.f32.gmra.mxu0 %v518
  %v582 = vpop.f32.mrf.mxu0
  %v583 = vadd.f32 0.0, %v582
  %584 = vmatmul.f32.gmra.mxu0 %v521
  %v585 = vpop.f32.mrf.mxu0
  %v586 = vadd.f32 0.0, %v585
  %587 = vmatmul.f32.gmra.mxu0 %v524
  %v588 = vpop.f32.mrf.mxu0
  %v589 = vadd.f32 0.0, %v588
  %590 = vdwg.mxu0
  %v592 = vsel %vm53, %v462, 0
  %v595 = vsel %vm53, %v463, 0
  %v598 = vsel %vm53, %v464, 0
  %v601 = vsel %vm53, %v465, 0
  %v604 = vsel %vm53, %v466, 0
  %v607 = vsel %vm53, %v467, 0
  %v610 = vsel %vm53, %v468, 0
  %v613 = vsel %vm53, %v469, 0
  %v616 = vsel %vm53, %v470, 0
  %v619 = vsel %vm53, %v471, 0
  %v622 = vsel %vm53, %v472, 0
  %v625 = vsel %vm53, %v473, 0
  %v628 = vsel %vm53, %v474, 0
  %v631 = vsel %vm53, %v475, 0
  %v634 = vsel %vm53, %v476, 0
  %v637 = vsel %vm53, %v477, 0
  %639 = vmatpush.msra.mxu0 0.0
  %640 = vmatpush.msra.mxu0 0.0
  %641 = vmatpush.msra.mxu0 0.0
  %642 = vmatpush.msra.mxu0 0.0
  %643 = vmatpush.msra.mxu0 0.0
  %644 = vmatpush.msra.mxu0 0.0
  %645 = vmatpush.msra.mxu0 0.0
  %646 = vmatpush.msra.mxu0 0.0
  %647 = vmatpush.msra.mxu0 0.0
  %648 = vmatpush.msra.mxu0 0.0
  %649 = vmatpush.msra.mxu0 0.0
  %650 = vmatpush.msra.mxu0 0.0
  %651 = vmatpush.msra.mxu0 %v34
  %652 = vmatpush.msra.mxu0 %v33
  %653 = vmatpush.msra.mxu0 %v32
  %654 = vmatpush.msra.mxu0 %v31
  %655 = vmatmul.f32.gmra.mxu0 %v592
  %v656 = vpop.f32.mrf.mxu0
  %v657 = vadd.f32 %v544, %v656
  %658 = vmatmul.f32.gmra.mxu0 %v595
  %v659 = vpop.f32.mrf.mxu0
  %v660 = vadd.f32 %v547, %v659
  %661 = vmatmul.f32.gmra.mxu0 %v598
  %v662 = vpop.f32.mrf.mxu0
  %v663 = vadd.f32 %v550, %v662
  %664 = vmatmul.f32.gmra.mxu0 %v601
  %v665 = vpop.f32.mrf.mxu0
  %v666 = vadd.f32 %v553, %v665
  %667 = vmatmul.f32.gmra.mxu0 %v604
  %v668 = vpop.f32.mrf.mxu0
  %v669 = vadd.f32 %v556, %v668
  %670 = vmatmul.f32.gmra.mxu0 %v607
  %v671 = vpop.f32.mrf.mxu0
  %v672 = vadd.f32 %v559, %v671
  %673 = vmatmul.f32.gmra.mxu0 %v610
  %v674 = vpop.f32.mrf.mxu0
  %v675 = vadd.f32 %v562, %v674
  %676 = vmatmul.f32.gmra.mxu0 %v613
  %v677 = vpop.f32.mrf.mxu0
  %v678 = vadd.f32 %v565, %v677
  %679 = vmatmul.f32.gmra.mxu0 %v616
  %v680 = vpop.f32.mrf.mxu0
  %v681 = vadd.f32 %v568, %v680
  %682 = vmatmul.f32.gmra.mxu0 %v619
  %v683 = vpop.f32.mrf.mxu0
  %v684 = vadd.f32 %v571, %v683
  %685 = vmatmul.f32.gmra.mxu0 %v622
  %v686 = vpop.f32.mrf.mxu0
  %v687 = vadd.f32 %v574, %v686
  %688 = vmatmul.f32.gmra.mxu0 %v625
  %v689 = vpop.f32.mrf.mxu0
  %v690 = vadd.f32 %v577, %v689
  %691 = vmatmul.f32.gmra.mxu0 %v628
  %v692 = vpop.f32.mrf.mxu0
  %v693 = vadd.f32 %v580, %v692
  %694 = vmatmul.f32.gmra.mxu0 %v631
  %v695 = vpop.f32.mrf.mxu0
  %v696 = vadd.f32 %v583, %v695
  %697 = vmatmul.f32.gmra.mxu0 %v634
  %v698 = vpop.f32.mrf.mxu0
  %v699 = vadd.f32 %v586, %v698
  %700 = vmatmul.f32.gmra.mxu0 %v637
  %v701 = vpop.f32.mrf.mxu0
  %v702 = vadd.f32 %v589, %v701
  %703 = vdwg.mxu0
  %v704 = vadd.f32 %v657, %v36
  %v705 = vadd.f32 %v660, %v36
  %v706 = vadd.f32 %v663, %v36
  %v707 = vadd.f32 %v666, %v36
  %v708 = vadd.f32 %v669, %v36
  %v709 = vadd.f32 %v672, %v36
  %v710 = vadd.f32 %v675, %v36
  %v711 = vadd.f32 %v678, %v36
  %v712 = vadd.f32 %v681, %v36
  %v713 = vadd.f32 %v684, %v36
  %v714 = vadd.f32 %v687, %v36
  %v715 = vadd.f32 %v690, %v36
  %v716 = vadd.f32 %v693, %v36
  %v717 = vadd.f32 %v696, %v36
  %v718 = vadd.f32 %v699, %v36
  %v719 = vadd.f32 %v702, %v36
  %v720 = vtanh.pop %v704
  %v721 = vtanh.pop %v705
  %v722 = vtanh.pop %v706
  %v723 = vtanh.pop %v707
  %v724 = vtanh.pop %v708
  %v725 = vtanh.pop %v709
  %v726 = vtanh.pop %v710
  %v727 = vtanh.pop %v711
  %v728 = vtanh.pop %v712
  %v729 = vtanh.pop %v713
  %v730 = vtanh.pop %v714
  %v731 = vtanh.pop %v715
  %v732 = vtanh.pop %v716
  %v733 = vtanh.pop %v717
  %v734 = vtanh.pop %v718
  %v735 = vtanh.pop %v719
  %s736 = scalar_lea.vmem %s0, 256
  %v737 = vld [vmem:[%s736] sm:$0xff]
  %v738 = vld [vmem:[%s736 + $0x8] sm:$0xff]
  %v739 = vld [vmem:[%s736 + $0x10] sm:$0xff]
  %v740 = vld [vmem:[%s736 + $0x18] sm:$0xff]
  %v741 = vld [vmem:[%s736 + $0x20] sm:$0xff]
  %v742 = vld [vmem:[%s736 + $0x28] sm:$0xff]
  %v743 = vld [vmem:[%s736 + $0x30] sm:$0xff]
  %v744 = vld [vmem:[%s736 + $0x38] sm:$0xff]
  %v745 = vld [vmem:[%s736 + $0x40] sm:$0xff]
  %v746 = vld [vmem:[%s736 + $0x48] sm:$0xff]
  %v747 = vld [vmem:[%s736 + $0x50] sm:$0xff]
  %v748 = vld [vmem:[%s736 + $0x58] sm:$0xff]
  %v749 = vld [vmem:[%s736 + $0x60] sm:$0xff]
  %v750 = vld [vmem:[%s736 + $0x68] sm:$0xff]
  %v751 = vld [vmem:[%s736 + $0x70] sm:$0xff]
  %v752 = vld [vmem:[%s736 + $0x78] sm:$0xff]
  %753 = vmatpush.msra.mxu0 0.0
  %754 = vmatpush.msra.mxu0 0.0
  %755 = vmatpush.msra.mxu0 0.0
  %756 = vmatpush.msra.mxu0 0.0
  %757 = vmatpush.msra.mxu0 0.0
  %758 = vmatpush.msra.mxu0 0.0
  %759 = vmatpush.msra.mxu0 0.0
  %760 = vmatpush.msra.mxu0 0.0
  %761 = vmatpush.msra.mxu0 0.0
  %762 = vmatpush.msra.mxu0 0.0
  %763 = vmatpush.msra.mxu0 0.0
  %764 = vmatpush.msra.mxu0 0.0
  %765 = vmatpush.msra.mxu0 %v24
  %766 = vmatpush.msra.mxu0 %v23
  %767 = vmatpush.msra.mxu0 %v22
  %768 = vmatpush.msra.mxu0 %v21
  %769 = vmatmul.f32.gmra.mxu0 %v592
  %v770 = vpop.f32.mrf.mxu0
  %v771 = vadd.f32 0.0, %v770
  %772 = vmatmul.f32.gmra.mxu0 %v595
  %v773 = vpop.f32.mrf.mxu0
  %v774 = vadd.f32 0.0, %v773
  %775 = vmatmul.f32.gmra.mxu0 %v598
  %v776 = vpop.f32.mrf.mxu0
  %v777 = vadd.f32 0.0, %v776
  %778 = vmatmul.f32.gmra.mxu0 %v601
  %v779 = vpop.f32.mrf.mxu0
  %v780 = vadd.f32 0.0, %v779
  %781 = vmatmul.f32.gmra.mxu0 %v604
  %v782 = vpop.f32.mrf.mxu0
  %v783 = vadd.f32 0.0, %v782
  %784 = vmatmul.f32.gmra.mxu0 %v607
  %v785 = vpop.f32.mrf.mxu0
  %v786 = vadd.f32 0.0, %v785
  %787 = vmatmul.f32.gmra.mxu0 %v610
  %v788 = vpop.f32.mrf.mxu0
  %v789 = vadd.f32 0.0, %v788
  %790 = vmatmul.f32.gmra.mxu0 %v613
  %v791 = vpop.f32.mrf.mxu0
  %v792 = vadd.f32 0.0, %v791
  %793 = vmatmul.f32.gmra.mxu0 %v616
  %v794 = vpop.f32.mrf.mxu0
  %v795 = vadd.f32 0.0, %v794
  %796 = vmatmul.f32.gmra.mxu0 %v619
  %v797 = vpop.f32.mrf.mxu0
  %v798 = vadd.f32 0.0, %v797
  %799 = vmatmul.f32.gmra.mxu0 %v622
  %v800 = vpop.f32.mrf.mxu0
  %v801 = vadd.f32 0.0, %v800
  %802 = vmatmul.f32.gmra.mxu0 %v625
  %v803 = vpop.f32.mrf.mxu0
  %v804 = vadd.f32 0.0, %v803
  %805 = vmatmul.f32.gmra.mxu0 %v628
  %v806 = vpop.f32.mrf.mxu0
  %v807 = vadd.f32 0.0, %v806
  %808 = vmatmul.f32.gmra.mxu0 %v631
  %v809 = vpop.f32.mrf.mxu0
  %v810 = vadd.f32 0.0, %v809
  %811 = vmatmul.f32.gmra.mxu0 %v634
  %v812 = vpop.f32.mrf.mxu0
  %v813 = vadd.f32 0.0, %v812
  %814 = vmatmul.f32.gmra.mxu0 %v637
  %v815 = vpop.f32.mrf.mxu0
  %v816 = vadd.f32 0.0, %v815
  %817 = vdwg.mxu0
  %v818 = vadd.f32 %v737, %v771
  %v819 = vadd.f32 %v738, %v774
  %v820 = vadd.f32 %v739, %v777
  %v821 = vadd.f32 %v740, %v780
  %v822 = vadd.f32 %v741, %v783
  %v823 = vadd.f32 %v742, %v786
  %v824 = vadd.f32 %v743, %v789
  %v825 = vadd.f32 %v744, %v792
  %v826 = vadd.f32 %v745, %v795
  %v827 = vadd.f32 %v746, %v798
  %v828 = vadd.f32 %v747, %v801
  %v829 = vadd.f32 %v748, %v804
  %v830 = vadd.f32 %v749, %v807
  %v831 = vadd.f32 %v750, %v810
  %v832 = vadd.f32 %v751, %v813
  %v833 = vadd.f32 %v752, %v816
  %v834 = vtanh.pop %v818
  %v835 = vtanh.pop %v819
  %v836 = vtanh.pop %v820
  %v837 = vtanh.pop %v821
  %v838 = vtanh.pop %v822
  %v839 = vtanh.pop %v823
  %v840 = vtanh.pop %v824
  %v841 = vtanh.pop %v825
  %v842 = vtanh.pop %v826
  %v843 = vtanh.pop %v827
  %v844 = vtanh.pop %v828
  %v845 = vtanh.pop %v829
  %v846 = vtanh.pop %v830
  %v847 = vtanh.pop %v831
  %v848 = vtanh.pop %v832
  %v849 = vtanh.pop %v833
  %v851 = vsel %vm53, %v720, 0
  %v854 = vsel %vm53, %v721, 0
  %v857 = vsel %vm53, %v722, 0
  %v860 = vsel %vm53, %v723, 0
  %v863 = vsel %vm53, %v724, 0
  %v866 = vsel %vm53, %v725, 0
  %v869 = vsel %vm53, %v726, 0
  %v872 = vsel %vm53, %v727, 0
  %v875 = vsel %vm53, %v728, 0
  %v878 = vsel %vm53, %v729, 0
  %v881 = vsel %vm53, %v730, 0
  %v884 = vsel %vm53, %v731, 0
  %v887 = vsel %vm53, %v732, 0
  %v890 = vsel %vm53, %v733, 0
  %v893 = vsel %vm53, %v734, 0
  %v896 = vsel %vm53, %v735, 0
  %898 = vmatpush.msra.mxu0 0.0
  %899 = vmatpush.msra.mxu0 0.0
  %900 = vmatpush.msra.mxu0 0.0
  %901 = vmatpush.msra.mxu0 0.0
  %902 = vmatpush.msra.mxu0 0.0
  %903 = vmatpush.msra.mxu0 0.0
  %904 = vmatpush.msra.mxu0 0.0
  %905 = vmatpush.msra.mxu0 0.0
  %906 = vmatpush.msra.mxu0 0.0
  %907 = vmatpush.msra.mxu0 0.0
  %908 = vmatpush.msra.mxu0 0.0
  %909 = vmatpush.msra.mxu0 0.0
  %910 = vmatpush.msra.mxu0 %v29
  %911 = vmatpush.msra.mxu0 %v28
  %912 = vmatpush.msra.mxu0 %v27
  %913 = vmatpush.msra.mxu0 %v26
  %914 = vmatmul.f32.gmra.mxu0 %v851
  %v915 = vpop.f32.mrf.mxu0
  %v916 = vadd.f32 0.0, %v915
  %917 = vmatmul.f32.gmra.mxu0 %v854
  %v918 = vpop.f32.mrf.mxu0
  %v919 = vadd.f32 0.0, %v918
  %920 = vmatmul.f32.gmra.mxu0 %v857
  %v921 = vpop.f32.mrf.mxu0
  %v922 = vadd.f32 0.0, %v921
  %923 = vmatmul.f32.gmra.mxu0 %v860
  %v924 = vpop.f32.mrf.mxu0
  %v925 = vadd.f32 0.0, %v924
  %926 = vmatmul.f32.gmra.mxu0 %v863
  %v927 = vpop.f32.mrf.mxu0
  %v928 = vadd.f32 0.0, %v927
  %929 = vmatmul.f32.gmra.mxu0 %v866
  %v930 = vpop.f32.mrf.mxu0
  %v931 = vadd.f32 0.0, %v930
  %932 = vmatmul.f32.gmra.mxu0 %v869
  %v933 = vpop.f32.mrf.mxu0
  %v934 = vadd.f32 0.0, %v933
  %935 = vmatmul.f32.gmra.mxu0 %v872
  %v936 = vpop.f32.mrf.mxu0
  %v937 = vadd.f32 0.0, %v936
  %938 = vmatmul.f32.gmra.mxu0 %v875
  %v939 = vpop.f32.mrf.mxu0
  %v940 = vadd.f32 0.0, %v939
  %941 = vmatmul.f32.gmra.mxu0 %v878
  %v942 = vpop.f32.mrf.mxu0
  %v943 = vadd.f32 0.0, %v942
  %944 = vmatmul.f32.gmra.mxu0 %v881
  %v945 = vpop.f32.mrf.mxu0
  %v946 = vadd.f32 0.0, %v945
  %947 = vmatmul.f32.gmra.mxu0 %v884
  %v948 = vpop.f32.mrf.mxu0
  %v949 = vadd.f32 0.0, %v948
  %950 = vmatmul.f32.gmra.mxu0 %v887
  %v951 = vpop.f32.mrf.mxu0
  %v952 = vadd.f32 0.0, %v951
  %953 = vmatmul.f32.gmra.mxu0 %v890
  %v954 = vpop.f32.mrf.mxu0
  %v955 = vadd.f32 0.0, %v954
  %956 = vmatmul.f32.gmra.mxu0 %v893
  %v957 = vpop.f32.mrf.mxu0
  %v958 = vadd.f32 0.0, %v957
  %959 = vmatmul.f32.gmra.mxu0 %v896
  %v960 = vpop.f32.mrf.mxu0
  %v961 = vadd.f32 0.0, %v960
  %962 = vdwg.mxu0
  %v964 = vsel %vm53, %v834, 0
  %v967 = vsel %vm53, %v835, 0
  %v970 = vsel %vm53, %v836, 0
  %v973 = vsel %vm53, %v837, 0
  %v976 = vsel %vm53, %v838, 0
  %v979 = vsel %vm53, %v839, 0
  %v982 = vsel %vm53, %v840, 0
  %v985 = vsel %vm53, %v841, 0
  %v988 = vsel %vm53, %v842, 0
  %v991 = vsel %vm53, %v843, 0
  %v994 = vsel %vm53, %v844, 0
  %v997 = vsel %vm53, %v845, 0
  %v1000 = vsel %vm53, %v846, 0
  %v1003 = vsel %vm53, %v847, 0
  %v1006 = vsel %vm53, %v848, 0
  %v1009 = vsel %vm53, %v849, 0
  %1011 = vmatpush.msra.mxu0 0.0
  %1012 = vmatpush.msra.mxu0 0.0
  %1013 = vmatpush.msra.mxu0 0.0
  %1014 = vmatpush.msra.mxu0 0.0
  %1015 = vmatpush.msra.mxu0 0.0
  %1016 = vmatpush.msra.mxu0 0.0
  %1017 = vmatpush.msra.mxu0 0.0
  %1018 = vmatpush.msra.mxu0 0.0
  %1019 = vmatpush.msra.mxu0 0.0
  %1020 = vmatpush.msra.mxu0 0.0
  %1021 = vmatpush.msra.mxu0 0.0
  %1022 = vmatpush.msra.mxu0 0.0
  %1023 = vmatpush.msra.mxu0 %v34
  %1024 = vmatpush.msra.mxu0 %v33
  %1025 = vmatpush.msra.mxu0 %v32
  %1026 = vmatpush.msra.mxu0 %v31
  %1027 = vmatmul.f32.gmra.mxu0 %v964
  %v1028 = vpop.f32.mrf.mxu0
  %v1029 = vadd.f32 %v916, %v1028
  %1030 = vmatmul.f32.gmra.mxu0 %v967
  %v1031 = vpop.f32.mrf.mxu0
  %v1032 = vadd.f32 %v919, %v1031
  %1033 = vmatmul.f32.gmra.mxu0 %v970
  %v1034 = vpop.f32.mrf.mxu0
  %v1035 = vadd.f32 %v922, %v1034
  %1036 = vmatmul.f32.gmra.mxu0 %v973
  %v1037 = vpop.f32.mrf.mxu0
  %v1038 = vadd.f32 %v925, %v1037
  %1039 = vmatmul.f32.gmra.mxu0 %v976
  %v1040 = vpop.f32.mrf.mxu0
  %v1041 = vadd.f32 %v928, %v1040
  %1042 = vmatmul.f32.gmra.mxu0 %v979
  %v1043 = vpop.f32.mrf.mxu0
  %v1044 = vadd.f32 %v931, %v1043
  %1045 = vmatmul.f32.gmra.mxu0 %v982
  %v1046 = vpop.f32.mrf.mxu0
  %v1047 = vadd.f32 %v934, %v1046
  %1048 = vmatmul.f32.gmra.mxu0 %v985
  %v1049 = vpop.f32.mrf.mxu0
  %v1050 = vadd.f32 %v937, %v1049
  %1051 = vmatmul.f32.gmra.mxu0 %v988
  %v1052 = vpop.f32.mrf.mxu0
  %v1053 = vadd.f32 %v940, %v1052
  %1054 = vmatmul.f32.gmra.mxu0 %v991
  %v1055 = vpop.f32.mrf.mxu0
  %v1056 = vadd.f32 %v943, %v1055
  %1057 = vmatmul.f32.gmra.mxu0 %v994
  %v1058 = vpop.f32.mrf.mxu0
  %v1059 = vadd.f32 %v946, %v1058
  %1060 = vmatmul.f32.gmra.mxu0 %v997
  %v1061 = vpop.f32.mrf.mxu0
  %v1062 = vadd.f32 %v949, %v1061
  %1063 = vmatmul.f32.gmra.mxu0 %v1000
  %v1064 = vpop.f32.mrf.mxu0
  %v1065 = vadd.f32 %v952, %v1064
  %1066 = vmatmul.f32.gmra.mxu0 %v1003
  %v1067 = vpop.f32.mrf.mxu0
  %v1068 = vadd.f32 %v955, %v1067
  %1069 = vmatmul.f32.gmra.mxu0 %v1006
  %v1070 = vpop.f32.mrf.mxu0
  %v1071 = vadd.f32 %v958, %v1070
  %1072 = vmatmul.f32.gmra.mxu0 %v1009
  %v1073 = vpop.f32.mrf.mxu0
  %v1074 = vadd.f32 %v961, %v1073
  %1075 = vdwg.mxu0
  %v1076 = vadd.f32 %v1029, %v36
  %v1077 = vadd.f32 %v1032, %v36
  %v1078 = vadd.f32 %v1035, %v36
  %v1079 = vadd.f32 %v1038, %v36
  %v1080 = vadd.f32 %v1041, %v36
  %v1081 = vadd.f32 %v1044, %v36
  %v1082 = vadd.f32 %v1047, %v36
  %v1083 = vadd.f32 %v1050, %v36
  %v1084 = vadd.f32 %v1053, %v36
  %v1085 = vadd.f32 %v1056, %v36
  %v1086 = vadd.f32 %v1059, %v36
  %v1087 = vadd.f32 %v1062, %v36
  %v1088 = vadd.f32 %v1065, %v36
  %v1089 = vadd.f32 %v1068, %v36
  %v1090 = vadd.f32 %v1071, %v36
  %v1091 = vadd.f32 %v1074, %v36
  %v1092 = vtanh.pop %v1076
  %v1093 = vtanh.pop %v1077
  %v1094 = vtanh.pop %v1078
  %v1095 = vtanh.pop %v1079
  %v1096 = vtanh.pop %v1080
  %v1097 = vtanh.pop %v1081
  %v1098 = vtanh.pop %v1082
  %v1099 = vtanh.pop %v1083
  %v1100 = vtanh.pop %v1084
  %v1101 = vtanh.pop %v1085
  %v1102 = vtanh.pop %v1086
  %v1103 = vtanh.pop %v1087
  %v1104 = vtanh.pop %v1088
  %v1105 = vtanh.pop %v1089
  %v1106 = vtanh.pop %v1090
  %v1107 = vtanh.pop %v1091
  %s1108 = scalar_lea.vmem %s0, 384
  %v1109 = vld [vmem:[%s1108] sm:$0xff]
  %v1110 = vld [vmem:[%s1108 + $0x8] sm:$0xff]
  %v1111 = vld [vmem:[%s1108 + $0x10] sm:$0xff]
  %v1112 = vld [vmem:[%s1108 + $0x18] sm:$0xff]
  %v1113 = vld [vmem:[%s1108 + $0x20] sm:$0xff]
  %v1114 = vld [vmem:[%s1108 + $0x28] sm:$0xff]
  %v1115 = vld [vmem:[%s1108 + $0x30] sm:$0xff]
  %v1116 = vld [vmem:[%s1108 + $0x38] sm:$0xff]
  %v1117 = vld [vmem:[%s1108 + $0x40] sm:$0xff]
  %v1118 = vld [vmem:[%s1108 + $0x48] sm:$0xff]
  %v1119 = vld [vmem:[%s1108 + $0x50] sm:$0xff]
  %v1120 = vld [vmem:[%s1108 + $0x58] sm:$0xff]
  %v1121 = vld [vmem:[%s1108 + $0x60] sm:$0xff]
  %v1122 = vld [vmem:[%s1108 + $0x68] sm:$0xff]
  %v1123 = vld [vmem:[%s1108 + $0x70] sm:$0xff]
  %v1124 = vld [vmem:[%s1108 + $0x78] sm:$0xff]
  %1125 = vmatpush.msra.mxu0 0.0
  %1126 = vmatpush.msra.mxu0 0.0
  %1127 = vmatpush.msra.mxu0 0.0
  %1128 = vmatpush.msra.mxu0 0.0
  %1129 = vmatpush.msra.mxu0 0.0
  %1130 = vmatpush.msra.mxu0 0.0
  %1131 = vmatpush.msra.mxu0 0.0
  %1132 = vmatpush.msra.mxu0 0.0
  %1133 = vmatpush.msra.mxu0 0.0
  %1134 = vmatpush.msra.mxu0 0.0
  %1135 = vmatpush.msra.mxu0 0.0
  %1136 = vmatpush.msra.mxu0 0.0
  %1137 = vmatpush.msra.mxu0 %v24
  %1138 = vmatpush.msra.mxu0 %v23
  %1139 = vmatpush.msra.mxu0 %v22
  %1140 = vmatpush.msra.mxu0 %v21
  %1141 = vmatmul.f32.gmra.mxu0 %v964
  %v1142 = vpop.f32.mrf.mxu0
  %v1143 = vadd.f32 0.0, %v1142
  %1144 = vmatmul.f32.gmra.mxu0 %v967
  %v1145 = vpop.f32.mrf.mxu0
  %v1146 = vadd.f32 0.0, %v1145
  %1147 = vmatmul.f32.gmra.mxu0 %v970
  %v1148 = vpop.f32.mrf.mxu0
  %v1149 = vadd.f32 0.0, %v1148
  %1150 = vmatmul.f32.gmra.mxu0 %v973
  %v1151 = vpop.f32.mrf.mxu0
  %v1152 = vadd.f32 0.0, %v1151
  %1153 = vmatmul.f32.gmra.mxu0 %v976
  %v1154 = vpop.f32.mrf.mxu0
  %v1155 = vadd.f32 0.0, %v1154
  %1156 = vmatmul.f32.gmra.mxu0 %v979
  %v1157 = vpop.f32.mrf.mxu0
  %v1158 = vadd.f32 0.0, %v1157
  %1159 = vmatmul.f32.gmra.mxu0 %v982
  %v1160 = vpop.f32.mrf.mxu0
  %v1161 = vadd.f32 0.0, %v1160
  %1162 = vmatmul.f32.gmra.mxu0 %v985
  %v1163 = vpop.f32.mrf.mxu0
  %v1164 = vadd.f32 0.0, %v1163
  %1165 = vmatmul.f32.gmra.mxu0 %v988
  %v1166 = vpop.f32.mrf.mxu0
  %v1167 = vadd.f32 0.0, %v1166
  %1168 = vmatmul.f32.gmra.mxu0 %v991
  %v1169 = vpop.f32.mrf.mxu0
  %v1170 = vadd.f32 0.0, %v1169
  %1171 = vmatmul.f32.gmra.mxu0 %v994
  %v1172 = vpop.f32.mrf.mxu0
  %v1173 = vadd.f32 0.0, %v1172
  %1174 = vmatmul.f32.gmra.mxu0 %v997
  %v1175 = vpop.f32.mrf.mxu0
  %v1176 = vadd.f32 0.0, %v1175
  %1177 = vmatmul.f32.gmra.mxu0 %v1000
  %v1178 = vpop.f32.mrf.mxu0
  %v1179 = vadd.f32 0.0, %v1178
  %1180 = vmatmul.f32.gmra.mxu0 %v1003
  %v1181 = vpop.f32.mrf.mxu0
  %v1182 = vadd.f32 0.0, %v1181
  %1183 = vmatmul.f32.gmra.mxu0 %v1006
  %v1184 = vpop.f32.mrf.mxu0
  %v1185 = vadd.f32 0.0, %v1184
  %1186 = vmatmul.f32.gmra.mxu0 %v1009
  %v1187 = vpop.f32.mrf.mxu0
  %v1188 = vadd.f32 0.0, %v1187
  %1189 = vdwg.mxu0
  %v1190 = vadd.f32 %v1109, %v1143
  %v1191 = vadd.f32 %v1110, %v1146
  %v1192 = vadd.f32 %v1111, %v1149
  %v1193 = vadd.f32 %v1112, %v1152
  %v1194 = vadd.f32 %v1113, %v1155
  %v1195 = vadd.f32 %v1114, %v1158
  %v1196 = vadd.f32 %v1115, %v1161
  %v1197 = vadd.f32 %v1116, %v1164
  %v1198 = vadd.f32 %v1117, %v1167
  %v1199 = vadd.f32 %v1118, %v1170
  %v1200 = vadd.f32 %v1119, %v1173
  %v1201 = vadd.f32 %v1120, %v1176
  %v1202 = vadd.f32 %v1121, %v1179
  %v1203 = vadd.f32 %v1122, %v1182
  %v1204 = vadd.f32 %v1123, %v1185
  %v1205 = vadd.f32 %v1124, %v1188
  %v1206 = vtanh.pop %v1190
  %v1207 = vtanh.pop %v1191
  %v1208 = vtanh.pop %v1192
  %v1209 = vtanh.pop %v1193
  %v1210 = vtanh.pop %v1194
  %v1211 = vtanh.pop %v1195
  %v1212 = vtanh.pop %v1196
  %v1213 = vtanh.pop %v1197
  %v1214 = vtanh.pop %v1198
  %v1215 = vtanh.pop %v1199
  %v1216 = vtanh.pop %v1200
  %v1217 = vtanh.pop %v1201
  %v1218 = vtanh.pop %v1202
  %v1219 = vtanh.pop %v1203
  %v1220 = vtanh.pop %v1204
  %v1221 = vtanh.pop %v1205
  %v1223 = vsel %vm53, %v1092, 0
  %v1226 = vsel %vm53, %v1093, 0
  %v1229 = vsel %vm53, %v1094, 0
  %v1232 = vsel %vm53, %v1095, 0
  %v1235 = vsel %vm53, %v1096, 0
  %v1238 = vsel %vm53, %v1097, 0
  %v1241 = vsel %vm53, %v1098, 0
  %v1244 = vsel %vm53, %v1099, 0
  %v1247 = vsel %vm53, %v1100, 0
  %v1250 = vsel %vm53, %v1101, 0
  %v1253 = vsel %vm53, %v1102, 0
  %v1256 = vsel %vm53, %v1103, 0
  %v1259 = vsel %vm53, %v1104, 0
  %v1262 = vsel %vm53, %v1105, 0
  %v1265 = vsel %vm53, %v1106, 0
  %v1268 = vsel %vm53, %v1107, 0
  %1270 = vmatpush.msra.mxu0 0.0
  %1271 = vmatpush.msra.mxu0 0.0
  %1272 = vmatpush.msra.mxu0 0.0
  %1273 = vmatpush.msra.mxu0 0.0
  %1274 = vmatpush.msra.mxu0 0.0
  %1275 = vmatpush.msra.mxu0 0.0
  %1276 = vmatpush.msra.mxu0 0.0
  %1277 = vmatpush.msra.mxu0 0.0
  %1278 = vmatpush.msra.mxu0 0.0
  %1279 = vmatpush.msra.mxu0 0.0
  %1280 = vmatpush.msra.mxu0 0.0
  %1281 = vmatpush.msra.mxu0 0.0
  %1282 = vmatpush.msra.mxu0 %v29
  %1283 = vmatpush.msra.mxu0 %v28
  %1284 = vmatpush.msra.mxu0 %v27
  %1285 = vmatpush.msra.mxu0 %v26
  %1286 = vmatmul.f32.gmra.mxu0 %v1223
  %v1287 = vpop.f32.mrf.mxu0
  %v1288 = vadd.f32 0.0, %v1287
  %1289 = vmatmul.f32.gmra.mxu0 %v1226
  %v1290 = vpop.f32.mrf.mxu0
  %v1291 = vadd.f32 0.0, %v1290
  %1292 = vmatmul.f32.gmra.mxu0 %v1229
  %v1293 = vpop.f32.mrf.mxu0
  %v1294 = vadd.f32 0.0, %v1293
  %1295 = vmatmul.f32.gmra.mxu0 %v1232
  %v1296 = vpop.f32.mrf.mxu0
  %v1297 = vadd.f32 0.0, %v1296
  %1298 = vmatmul.f32.gmra.mxu0 %v1235
  %v1299 = vpop.f32.mrf.mxu0
  %v1300 = vadd.f32 0.0, %v1299
  %1301 = vmatmul.f32.gmra.mxu0 %v1238
  %v1302 = vpop.f32.mrf.mxu0
  %v1303 = vadd.f32 0.0, %v1302
  %1304 = vmatmul.f32.gmra.mxu0 %v1241
  %v1305 = vpop.f32.mrf.mxu0
  %v1306 = vadd.f32 0.0, %v1305
  %1307 = vmatmul.f32.gmra.mxu0 %v1244
  %v1308 = vpop.f32.mrf.mxu0
  %v1309 = vadd.f32 0.0, %v1308
  %1310 = vmatmul.f32.gmra.mxu0 %v1247
  %v1311 = vpop.f32.mrf.mxu0
  %v1312 = vadd.f32 0.0, %v1311
  %1313 = vmatmul.f32.gmra.mxu0 %v1250
  %v1314 = vpop.f32.mrf.mxu0
  %v1315 = vadd.f32 0.0, %v1314
  %1316 = vmatmul.f32.gmra.mxu0 %v1253
  %v1317 = vpop.f32.mrf.mxu0
  %v1318 = vadd.f32 0.0, %v1317
  %1319 = vmatmul.f32.gmra.mxu0 %v1256
  %v1320 = vpop.f32.mrf.mxu0
  %v1321 = vadd.f32 0.0, %v1320
  %1322 = vmatmul.f32.gmra.mxu0 %v1259
  %v1323 = vpop.f32.mrf.mxu0
  %v1324 = vadd.f32 0.0, %v1323
  %1325 = vmatmul.f32.gmra.mxu0 %v1262
  %v1326 = vpop.f32.mrf.mxu0
  %v1327 = vadd.f32 0.0, %v1326
  %1328 = vmatmul.f32.gmra.mxu0 %v1265
  %v1329 = vpop.f32.mrf.mxu0
  %v1330 = vadd.f32 0.0, %v1329
  %1331 = vmatmul.f32.gmra.mxu0 %v1268
  %v1332 = vpop.f32.mrf.mxu0
  %v1333 = vadd.f32 0.0, %v1332
  %1334 = vdwg.mxu0
  %v1336 = vsel %vm53, %v1206, 0
  %v1339 = vsel %vm53, %v1207, 0
  %v1342 = vsel %vm53, %v1208, 0
  %v1345 = vsel %vm53, %v1209, 0
  %v1348 = vsel %vm53, %v1210, 0
  %v1351 = vsel %vm53, %v1211, 0
  %v1354 = vsel %vm53, %v1212, 0
  %v1357 = vsel %vm53, %v1213, 0
  %v1360 = vsel %vm53, %v1214, 0
  %v1363 = vsel %vm53, %v1215, 0
  %v1366 = vsel %vm53, %v1216, 0
  %v1369 = vsel %vm53, %v1217, 0
  %v1372 = vsel %vm53, %v1218, 0
  %v1375 = vsel %vm53, %v1219, 0
  %v1378 = vsel %vm53, %v1220, 0
  %v1381 = vsel %vm53, %v1221, 0
  %1383 = vmatpush.msra.mxu0 0.0
  %1384 = vmatpush.msra.mxu0 0.0
  %1385 = vmatpush.msra.mxu0 0.0
  %1386 = vmatpush.msra.mxu0 0.0
  %1387 = vmatpush.msra.mxu0 0.0
  %1388 = vmatpush.msra.mxu0 0.0
  %1389 = vmatpush.msra.mxu0 0.0
  %1390 = vmatpush.msra.mxu0 0.0
  %1391 = vmatpush.msra.mxu0 0.0
  %1392 = vmatpush.msra.mxu0 0.0
  %1393 = vmatpush.msra.mxu0 0.0
  %1394 = vmatpush.msra.mxu0 0.0
  %1395 = vmatpush.msra.mxu0 %v34
  %1396 = vmatpush.msra.mxu0 %v33
  %1397 = vmatpush.msra.mxu0 %v32
  %1398 = vmatpush.msra.mxu0 %v31
  %1399 = vmatmul.f32.gmra.mxu0 %v1336
  %v1400 = vpop.f32.mrf.mxu0
  %v1401 = vadd.f32 %v1288, %v1400
  %1402 = vmatmul.f32.gmra.mxu0 %v1339
  %v1403 = vpop.f32.mrf.mxu0
  %v1404 = vadd.f32 %v1291, %v1403
  %1405 = vmatmul.f32.gmra.mxu0 %v1342
  %v1406 = vpop.f32.mrf.mxu0
  %v1407 = vadd.f32 %v1294, %v1406
  %1408 = vmatmul.f32.gmra.mxu0 %v1345
  %v1409 = vpop.f32.mrf.mxu0
  %v1410 = vadd.f32 %v1297, %v1409
  %1411 = vmatmul.f32.gmra.mxu0 %v1348
  %v1412 = vpop.f32.mrf.mxu0
  %v1413 = vadd.f32 %v1300, %v1412
  %1414 = vmatmul.f32.gmra.mxu0 %v1351
  %v1415 = vpop.f32.mrf.mxu0
  %v1416 = vadd.f32 %v1303, %v1415
  %1417 = vmatmul.f32.gmra.mxu0 %v1354
  %v1418 = vpop.f32.mrf.mxu0
  %v1419 = vadd.f32 %v1306, %v1418
  %1420 = vmatmul.f32.gmra.mxu0 %v1357
  %v1421 = vpop.f32.mrf.mxu0
  %v1422 = vadd.f32 %v1309, %v1421
  %1423 = vmatmul.f32.gmra.mxu0 %v1360
  %v1424 = vpop.f32.mrf.mxu0
  %v1425 = vadd.f32 %v1312, %v1424
  %1426 = vmatmul.f32.gmra.mxu0 %v1363
  %v1427 = vpop.f32.mrf.mxu0
  %v1428 = vadd.f32 %v1315, %v1427
  %1429 = vmatmul.f32.gmra.mxu0 %v1366
  %v1430 = vpop.f32.mrf.mxu0
  %v1431 = vadd.f32 %v1318, %v1430
  %1432 = vmatmul.f32.gmra.mxu0 %v1369
  %v1433 = vpop.f32.mrf.mxu0
  %v1434 = vadd.f32 %v1321, %v1433
  %1435 = vmatmul.f32.gmra.mxu0 %v1372
  %v1436 = vpop.f32.mrf.mxu0
  %v1437 = vadd.f32 %v1324, %v1436
  %1438 = vmatmul.f32.gmra.mxu0 %v1375
  %v1439 = vpop.f32.mrf.mxu0
  %v1440 = vadd.f32 %v1327, %v1439
  %1441 = vmatmul.f32.gmra.mxu0 %v1378
  %v1442 = vpop.f32.mrf.mxu0
  %v1443 = vadd.f32 %v1330, %v1442
  %1444 = vmatmul.f32.gmra.mxu0 %v1381
  %v1445 = vpop.f32.mrf.mxu0
  %v1446 = vadd.f32 %v1333, %v1445
  %1447 = vdwg.mxu0
  %v1448 = vadd.f32 %v1401, %v36
  %v1449 = vadd.f32 %v1404, %v36
  %v1450 = vadd.f32 %v1407, %v36
  %v1451 = vadd.f32 %v1410, %v36
  %v1452 = vadd.f32 %v1413, %v36
  %v1453 = vadd.f32 %v1416, %v36
  %v1454 = vadd.f32 %v1419, %v36
  %v1455 = vadd.f32 %v1422, %v36
  %v1456 = vadd.f32 %v1425, %v36
  %v1457 = vadd.f32 %v1428, %v36
  %v1458 = vadd.f32 %v1431, %v36
  %v1459 = vadd.f32 %v1434, %v36
  %v1460 = vadd.f32 %v1437, %v36
  %v1461 = vadd.f32 %v1440, %v36
  %v1462 = vadd.f32 %v1443, %v36
  %v1463 = vadd.f32 %v1446, %v36
  %v1464 = vtanh.pop %v1448
  %v1465 = vtanh.pop %v1449
  %v1466 = vtanh.pop %v1450
  %v1467 = vtanh.pop %v1451
  %v1468 = vtanh.pop %v1452
  %v1469 = vtanh.pop %v1453
  %v1470 = vtanh.pop %v1454
  %v1471 = vtanh.pop %v1455
  %v1472 = vtanh.pop %v1456
  %v1473 = vtanh.pop %v1457
  %v1474 = vtanh.pop %v1458
  %v1475 = vtanh.pop %v1459
  %v1476 = vtanh.pop %v1460
  %v1477 = vtanh.pop %v1461
  %v1478 = vtanh.pop %v1462
  %v1479 = vtanh.pop %v1463
  %s1480 = scalar_lea.vmem %s0, 512
  %v1481 = vld [vmem:[%s1480] sm:$0xff]
  %v1482 = vld [vmem:[%s1480 + $0x8] sm:$0xff]
  %v1483 = vld [vmem:[%s1480 + $0x10] sm:$0xff]
  %v1484 = vld [vmem:[%s1480 + $0x18] sm:$0xff]
  %v1485 = vld [vmem:[%s1480 + $0x20] sm:$0xff]
  %v1486 = vld [vmem:[%s1480 + $0x28] sm:$0xff]
  %v1487 = vld [vmem:[%s1480 + $0x30] sm:$0xff]
  %v1488 = vld [vmem:[%s1480 + $0x38] sm:$0xff]
  %v1489 = vld [vmem:[%s1480 + $0x40] sm:$0xff]
  %v1490 = vld [vmem:[%s1480 + $0x48] sm:$0xff]
  %v1491 = vld [vmem:[%s1480 + $0x50] sm:$0xff]
  %v1492 = vld [vmem:[%s1480 + $0x58] sm:$0xff]
  %v1493 = vld [vmem:[%s1480 + $0x60] sm:$0xff]
  %v1494 = vld [vmem:[%s1480 + $0x68] sm:$0xff]
  %v1495 = vld [vmem:[%s1480 + $0x70] sm:$0xff]
  %v1496 = vld [vmem:[%s1480 + $0x78] sm:$0xff]
  %1497 = vmatpush.msra.mxu0 0.0
  %1498 = vmatpush.msra.mxu0 0.0
  %1499 = vmatpush.msra.mxu0 0.0
  %1500 = vmatpush.msra.mxu0 0.0
  %1501 = vmatpush.msra.mxu0 0.0
  %1502 = vmatpush.msra.mxu0 0.0
  %1503 = vmatpush.msra.mxu0 0.0
  %1504 = vmatpush.msra.mxu0 0.0
  %1505 = vmatpush.msra.mxu0 0.0
  %1506 = vmatpush.msra.mxu0 0.0
  %1507 = vmatpush.msra.mxu0 0.0
  %1508 = vmatpush.msra.mxu0 0.0
  %1509 = vmatpush.msra.mxu0 %v24
  %1510 = vmatpush.msra.mxu0 %v23
  %1511 = vmatpush.msra.mxu0 %v22
  %1512 = vmatpush.msra.mxu0 %v21
  %1513 = vmatmul.f32.gmra.mxu0 %v1336
  %v1514 = vpop.f32.mrf.mxu0
  %v1515 = vadd.f32 0.0, %v1514
  %1516 = vmatmul.f32.gmra.mxu0 %v1339
  %v1517 = vpop.f32.mrf.mxu0
  %v1518 = vadd.f32 0.0, %v1517
  %1519 = vmatmul.f32.gmra.mxu0 %v1342
  %v1520 = vpop.f32.mrf.mxu0
  %v1521 = vadd.f32 0.0, %v1520
  %1522 = vmatmul.f32.gmra.mxu0 %v1345
  %v1523 = vpop.f32.mrf.mxu0
  %v1524 = vadd.f32 0.0, %v1523
  %1525 = vmatmul.f32.gmra.mxu0 %v1348
  %v1526 = vpop.f32.mrf.mxu0
  %v1527 = vadd.f32 0.0, %v1526
  %1528 = vmatmul.f32.gmra.mxu0 %v1351
  %v1529 = vpop.f32.mrf.mxu0
  %v1530 = vadd.f32 0.0, %v1529
  %1531 = vmatmul.f32.gmra.mxu0 %v1354
  %v1532 = vpop.f32.mrf.mxu0
  %v1533 = vadd.f32 0.0, %v1532
  %1534 = vmatmul.f32.gmra.mxu0 %v1357
  %v1535 = vpop.f32.mrf.mxu0
  %v1536 = vadd.f32 0.0, %v1535
  %1537 = vmatmul.f32.gmra.mxu0 %v1360
  %v1538 = vpop.f32.mrf.mxu0
  %v1539 = vadd.f32 0.0, %v1538
  %1540 = vmatmul.f32.gmra.mxu0 %v1363
  %v1541 = vpop.f32.mrf.mxu0
  %v1542 = vadd.f32 0.0, %v1541
  %1543 = vmatmul.f32.gmra.mxu0 %v1366
  %v1544 = vpop.f32.mrf.mxu0
  %v1545 = vadd.f32 0.0, %v1544
  %1546 = vmatmul.f32.gmra.mxu0 %v1369
  %v1547 = vpop.f32.mrf.mxu0
  %v1548 = vadd.f32 0.0, %v1547
  %1549 = vmatmul.f32.gmra.mxu0 %v1372
  %v1550 = vpop.f32.mrf.mxu0
  %v1551 = vadd.f32 0.0, %v1550
  %1552 = vmatmul.f32.gmra.mxu0 %v1375
  %v1553 = vpop.f32.mrf.mxu0
  %v1554 = vadd.f32 0.0, %v1553
  %1555 = vmatmul.f32.gmra.mxu0 %v1378
  %v1556 = vpop.f32.mrf.mxu0
  %v1557 = vadd.f32 0.0, %v1556
  %1558 = vmatmul.f32.gmra.mxu0 %v1381
  %v1559 = vpop.f32.mrf.mxu0
  %v1560 = vadd.f32 0.0, %v1559
  %1561 = vdwg.mxu0
  %v1562 = vadd.f32 %v1481, %v1515
  %v1563 = vadd.f32 %v1482, %v1518
  %v1564 = vadd.f32 %v1483, %v1521
  %v1565 = vadd.f32 %v1484, %v1524
  %v1566 = vadd.f32 %v1485, %v1527
  %v1567 = vadd.f32 %v1486, %v1530
  %v1568 = vadd.f32 %v1487, %v1533
  %v1569 = vadd.f32 %v1488, %v1536
  %v1570 = vadd.f32 %v1489, %v1539
  %v1571 = vadd.f32 %v1490, %v1542
  %v1572 = vadd.f32 %v1491, %v1545
  %v1573 = vadd.f32 %v1492, %v1548
  %v1574 = vadd.f32 %v1493, %v1551
  %v1575 = vadd.f32 %v1494, %v1554
  %v1576 = vadd.f32 %v1495, %v1557
  %v1577 = vadd.f32 %v1496, %v1560
  %v1578 = vtanh.pop %v1562
  %v1579 = vtanh.pop %v1563
  %v1580 = vtanh.pop %v1564
  %v1581 = vtanh.pop %v1565
  %v1582 = vtanh.pop %v1566
  %v1583 = vtanh.pop %v1567
  %v1584 = vtanh.pop %v1568
  %v1585 = vtanh.pop %v1569
  %v1586 = vtanh.pop %v1570
  %v1587 = vtanh.pop %v1571
  %v1588 = vtanh.pop %v1572
  %v1589 = vtanh.pop %v1573
  %v1590 = vtanh.pop %v1574
  %v1591 = vtanh.pop %v1575
  %v1592 = vtanh.pop %v1576
  %v1593 = vtanh.pop %v1577
  %v1595 = vsel %vm53, %v1464, 0
  %v1598 = vsel %vm53, %v1465, 0
  %v1601 = vsel %vm53, %v1466, 0
  %v1604 = vsel %vm53, %v1467, 0
  %v1607 = vsel %vm53, %v1468, 0
  %v1610 = vsel %vm53, %v1469, 0
  %v1613 = vsel %vm53, %v1470, 0
  %v1616 = vsel %vm53, %v1471, 0
  %v1619 = vsel %vm53, %v1472, 0
  %v1622 = vsel %vm53, %v1473, 0
  %v1625 = vsel %vm53, %v1474, 0
  %v1628 = vsel %vm53, %v1475, 0
  %v1631 = vsel %vm53, %v1476, 0
  %v1634 = vsel %vm53, %v1477, 0
  %v1637 = vsel %vm53, %v1478, 0
  %v1640 = vsel %vm53, %v1479, 0
  %1642 = vmatpush.msra.mxu0 0.0
  %1643 = vmatpush.msra.mxu0 0.0
  %1644 = vmatpush.msra.mxu0 0.0
  %1645 = vmatpush.msra.mxu0 0.0
  %1646 = vmatpush.msra.mxu0 0.0
  %1647 = vmatpush.msra.mxu0 0.0
  %1648 = vmatpush.msra.mxu0 0.0
  %1649 = vmatpush.msra.mxu0 0.0
  %1650 = vmatpush.msra.mxu0 0.0
  %1651 = vmatpush.msra.mxu0 0.0
  %1652 = vmatpush.msra.mxu0 0.0
  %1653 = vmatpush.msra.mxu0 0.0
  %1654 = vmatpush.msra.mxu0 %v29
  %1655 = vmatpush.msra.mxu0 %v28
  %1656 = vmatpush.msra.mxu0 %v27
  %1657 = vmatpush.msra.mxu0 %v26
  %1658 = vmatmul.f32.gmra.mxu0 %v1595
  %v1659 = vpop.f32.mrf.mxu0
  %v1660 = vadd.f32 0.0, %v1659
  %1661 = vmatmul.f32.gmra.mxu0 %v1598
  %v1662 = vpop.f32.mrf.mxu0
  %v1663 = vadd.f32 0.0, %v1662
  %1664 = vmatmul.f32.gmra.mxu0 %v1601
  %v1665 = vpop.f32.mrf.mxu0
  %v1666 = vadd.f32 0.0, %v1665
  %1667 = vmatmul.f32.gmra.mxu0 %v1604
  %v1668 = vpop.f32.mrf.mxu0
  %v1669 = vadd.f32 0.0, %v1668
  %1670 = vmatmul.f32.gmra.mxu0 %v1607
  %v1671 = vpop.f32.mrf.mxu0
  %v1672 = vadd.f32 0.0, %v1671
  %1673 = vmatmul.f32.gmra.mxu0 %v1610
  %v1674 = vpop.f32.mrf.mxu0
  %v1675 = vadd.f32 0.0, %v1674
  %1676 = vmatmul.f32.gmra.mxu0 %v1613
  %v1677 = vpop.f32.mrf.mxu0
  %v1678 = vadd.f32 0.0, %v1677
  %1679 = vmatmul.f32.gmra.mxu0 %v1616
  %v1680 = vpop.f32.mrf.mxu0
  %v1681 = vadd.f32 0.0, %v1680
  %1682 = vmatmul.f32.gmra.mxu0 %v1619
  %v1683 = vpop.f32.mrf.mxu0
  %v1684 = vadd.f32 0.0, %v1683
  %1685 = vmatmul.f32.gmra.mxu0 %v1622
  %v1686 = vpop.f32.mrf.mxu0
  %v1687 = vadd.f32 0.0, %v1686
  %1688 = vmatmul.f32.gmra.mxu0 %v1625
  %v1689 = vpop.f32.mrf.mxu0
  %v1690 = vadd.f32 0.0, %v1689
  %1691 = vmatmul.f32.gmra.mxu0 %v1628
  %v1692 = vpop.f32.mrf.mxu0
  %v1693 = vadd.f32 0.0, %v1692
  %1694 = vmatmul.f32.gmra.mxu0 %v1631
  %v1695 = vpop.f32.mrf.mxu0
  %v1696 = vadd.f32 0.0, %v1695
  %1697 = vmatmul.f32.gmra.mxu0 %v1634
  %v1698 = vpop.f32.mrf.mxu0
  %v1699 = vadd.f32 0.0, %v1698
  %1700 = vmatmul.f32.gmra.mxu0 %v1637
  %v1701 = vpop.f32.mrf.mxu0
  %v1702 = vadd.f32 0.0, %v1701
  %1703 = vmatmul.f32.gmra.mxu0 %v1640
  %v1704 = vpop.f32.mrf.mxu0
  %v1705 = vadd.f32 0.0, %v1704
  %1706 = vdwg.mxu0
  %v1708 = vsel %vm53, %v1578, 0
  %v1711 = vsel %vm53, %v1579, 0
  %v1714 = vsel %vm53, %v1580, 0
  %v1717 = vsel %vm53, %v1581, 0
  %v1720 = vsel %vm53, %v1582, 0
  %v1723 = vsel %vm53, %v1583, 0
  %v1726 = vsel %vm53, %v1584, 0
  %v1729 = vsel %vm53, %v1585, 0
  %v1732 = vsel %vm53, %v1586, 0
  %v1735 = vsel %vm53, %v1587, 0
  %v1738 = vsel %vm53, %v1588, 0
  %v1741 = vsel %vm53, %v1589, 0
  %v1744 = vsel %vm53, %v1590, 0
  %v1747 = vsel %vm53, %v1591, 0
  %v1750 = vsel %vm53, %v1592, 0
  %v1753 = vsel %vm53, %v1593, 0
  %1755 = vmatpush.msra.mxu0 0.0
  %1756 = vmatpush.msra.mxu0 0.0
  %1757 = vmatpush.msra.mxu0 0.0
  %1758 = vmatpush.msra.mxu0 0.0
  %1759 = vmatpush.msra.mxu0 0.0
  %1760 = vmatpush.msra.mxu0 0.0
  %1761 = vmatpush.msra.mxu0 0.0
  %1762 = vmatpush.msra.mxu0 0.0
  %1763 = vmatpush.msra.mxu0 0.0
  %1764 = vmatpush.msra.mxu0 0.0
  %1765 = vmatpush.msra.mxu0 0.0
  %1766 = vmatpush.msra.mxu0 0.0
  %1767 = vmatpush.msra.mxu0 %v34
  %1768 = vmatpush.msra.mxu0 %v33
  %1769 = vmatpush.msra.mxu0 %v32
  %1770 = vmatpush.msra.mxu0 %v31
  %1771 = vmatmul.f32.gmra.mxu0 %v1708
  %v1772 = vpop.f32.mrf.mxu0
  %v1773 = vadd.f32 %v1660, %v1772
  %1774 = vmatmul.f32.gmra.mxu0 %v1711
  %v1775 = vpop.f32.mrf.mxu0
  %v1776 = vadd.f32 %v1663, %v1775
  %1777 = vmatmul.f32.gmra.mxu0 %v1714
  %v1778 = vpop.f32.mrf.mxu0
  %v1779 = vadd.f32 %v1666, %v1778
  %1780 = vmatmul.f32.gmra.mxu0 %v1717
  %v1781 = vpop.f32.mrf.mxu0
  %v1782 = vadd.f32 %v1669, %v1781
  %1783 = vmatmul.f32.gmra.mxu0 %v1720
  %v1784 = vpop.f32.mrf.mxu0
  %v1785 = vadd.f32 %v1672, %v1784
  %1786 = vmatmul.f32.gmra.mxu0 %v1723
  %v1787 = vpop.f32.mrf.mxu0
  %v1788 = vadd.f32 %v1675, %v1787
  %1789 = vmatmul.f32.gmra.mxu0 %v1726
  %v1790 = vpop.f32.mrf.mxu0
  %v1791 = vadd.f32 %v1678, %v1790
  %1792 = vmatmul.f32.gmra.mxu0 %v1729
  %v1793 = vpop.f32.mrf.mxu0
  %v1794 = vadd.f32 %v1681, %v1793
  %1795 = vmatmul.f32.gmra.mxu0 %v1732
  %v1796 = vpop.f32.mrf.mxu0
  %v1797 = vadd.f32 %v1684, %v1796
  %1798 = vmatmul.f32.gmra.mxu0 %v1735
  %v1799 = vpop.f32.mrf.mxu0
  %v1800 = vadd.f32 %v1687, %v1799
  %1801 = vmatmul.f32.gmra.mxu0 %v1738
  %v1802 = vpop.f32.mrf.mxu0
  %v1803 = vadd.f32 %v1690, %v1802
  %1804 = vmatmul.f32.gmra.mxu0 %v1741
  %v1805 = vpop.f32.mrf.mxu0
  %v1806 = vadd.f32 %v1693, %v1805
  %1807 = vmatmul.f32.gmra.mxu0 %v1744
  %v1808 = vpop.f32.mrf.mxu0
  %v1809 = vadd.f32 %v1696, %v1808
  %1810 = vmatmul.f32.gmra.mxu0 %v1747
  %v1811 = vpop.f32.mrf.mxu0
  %v1812 = vadd.f32 %v1699, %v1811
  %1813 = vmatmul.f32.gmra.mxu0 %v1750
  %v1814 = vpop.f32.mrf.mxu0
  %v1815 = vadd.f32 %v1702, %v1814
  %1816 = vmatmul.f32.gmra.mxu0 %v1753
  %v1817 = vpop.f32.mrf.mxu0
  %v1818 = vadd.f32 %v1705, %v1817
  %1819 = vdwg.mxu0
  %v1820 = vadd.f32 %v1773, %v36
  %v1821 = vadd.f32 %v1776, %v36
  %v1822 = vadd.f32 %v1779, %v36
  %v1823 = vadd.f32 %v1782, %v36
  %v1824 = vadd.f32 %v1785, %v36
  %v1825 = vadd.f32 %v1788, %v36
  %v1826 = vadd.f32 %v1791, %v36
  %v1827 = vadd.f32 %v1794, %v36
  %v1828 = vadd.f32 %v1797, %v36
  %v1829 = vadd.f32 %v1800, %v36
  %v1830 = vadd.f32 %v1803, %v36
  %v1831 = vadd.f32 %v1806, %v36
  %v1832 = vadd.f32 %v1809, %v36
  %v1833 = vadd.f32 %v1812, %v36
  %v1834 = vadd.f32 %v1815, %v36
  %v1835 = vadd.f32 %v1818, %v36
  %v1836 = vtanh.pop %v1820
  %v1837 = vtanh.pop %v1821
  %v1838 = vtanh.pop %v1822
  %v1839 = vtanh.pop %v1823
  %v1840 = vtanh.pop %v1824
  %v1841 = vtanh.pop %v1825
  %v1842 = vtanh.pop %v1826
  %v1843 = vtanh.pop %v1827
  %v1844 = vtanh.pop %v1828
  %v1845 = vtanh.pop %v1829
  %v1846 = vtanh.pop %v1830
  %v1847 = vtanh.pop %v1831
  %v1848 = vtanh.pop %v1832
  %v1849 = vtanh.pop %v1833
  %v1850 = vtanh.pop %v1834
  %v1851 = vtanh.pop %v1835
  %s1852 = scalar_lea.vmem %s0, 640
  %v1853 = vld [vmem:[%s1852] sm:$0xff]
  %v1854 = vld [vmem:[%s1852 + $0x8] sm:$0xff]
  %v1855 = vld [vmem:[%s1852 + $0x10] sm:$0xff]
  %v1856 = vld [vmem:[%s1852 + $0x18] sm:$0xff]
  %v1857 = vld [vmem:[%s1852 + $0x20] sm:$0xff]
  %v1858 = vld [vmem:[%s1852 + $0x28] sm:$0xff]
  %v1859 = vld [vmem:[%s1852 + $0x30] sm:$0xff]
  %v1860 = vld [vmem:[%s1852 + $0x38] sm:$0xff]
  %v1861 = vld [vmem:[%s1852 + $0x40] sm:$0xff]
  %v1862 = vld [vmem:[%s1852 + $0x48] sm:$0xff]
  %v1863 = vld [vmem:[%s1852 + $0x50] sm:$0xff]
  %v1864 = vld [vmem:[%s1852 + $0x58] sm:$0xff]
  %v1865 = vld [vmem:[%s1852 + $0x60] sm:$0xff]
  %v1866 = vld [vmem:[%s1852 + $0x68] sm:$0xff]
  %v1867 = vld [vmem:[%s1852 + $0x70] sm:$0xff]
  %v1868 = vld [vmem:[%s1852 + $0x78] sm:$0xff]
  %1869 = vmatpush.msra.mxu0 0.0
  %1870 = vmatpush.msra.mxu0 0.0
  %1871 = vmatpush.msra.mxu0 0.0
  %1872 = vmatpush.msra.mxu0 0.0
  %1873 = vmatpush.msra.mxu0 0.0
  %1874 = vmatpush.msra.mxu0 0.0
  %1875 = vmatpush.msra.mxu0 0.0
  %1876 = vmatpush.msra.mxu0 0.0
  %1877 = vmatpush.msra.mxu0 0.0
  %1878 = vmatpush.msra.mxu0 0.0
  %1879 = vmatpush.msra.mxu0 0.0
  %1880 = vmatpush.msra.mxu0 0.0
  %1881 = vmatpush.msra.mxu0 %v24
  %1882 = vmatpush.msra.mxu0 %v23
  %1883 = vmatpush.msra.mxu0 %v22
  %1884 = vmatpush.msra.mxu0 %v21
  %1885 = vmatmul.f32.gmra.mxu0 %v1708
  %v1886 = vpop.f32.mrf.mxu0
  %v1887 = vadd.f32 0.0, %v1886
  %1888 = vmatmul.f32.gmra.mxu0 %v1711
  %v1889 = vpop.f32.mrf.mxu0
  %v1890 = vadd.f32 0.0, %v1889
  %1891 = vmatmul.f32.gmra.mxu0 %v1714
  %v1892 = vpop.f32.mrf.mxu0
  %v1893 = vadd.f32 0.0, %v1892
  %1894 = vmatmul.f32.gmra.mxu0 %v1717
  %v1895 = vpop.f32.mrf.mxu0
  %v1896 = vadd.f32 0.0, %v1895
  %1897 = vmatmul.f32.gmra.mxu0 %v1720
  %v1898 = vpop.f32.mrf.mxu0
  %v1899 = vadd.f32 0.0, %v1898
  %1900 = vmatmul.f32.gmra.mxu0 %v1723
  %v1901 = vpop.f32.mrf.mxu0
  %v1902 = vadd.f32 0.0, %v1901
  %1903 = vmatmul.f32.gmra.mxu0 %v1726
  %v1904 = vpop.f32.mrf.mxu0
  %v1905 = vadd.f32 0.0, %v1904
  %1906 = vmatmul.f32.gmra.mxu0 %v1729
  %v1907 = vpop.f32.mrf.mxu0
  %v1908 = vadd.f32 0.0, %v1907
  %1909 = vmatmul.f32.gmra.mxu0 %v1732
  %v1910 = vpop.f32.mrf.mxu0
  %v1911 = vadd.f32 0.0, %v1910
  %1912 = vmatmul.f32.gmra.mxu0 %v1735
  %v1913 = vpop.f32.mrf.mxu0
  %v1914 = vadd.f32 0.0, %v1913
  %1915 = vmatmul.f32.gmra.mxu0 %v1738
  %v1916 = vpop.f32.mrf.mxu0
  %v1917 = vadd.f32 0.0, %v1916
  %1918 = vmatmul.f32.gmra.mxu0 %v1741
  %v1919 = vpop.f32.mrf.mxu0
  %v1920 = vadd.f32 0.0, %v1919
  %1921 = vmatmul.f32.gmra.mxu0 %v1744
  %v1922 = vpop.f32.mrf.mxu0
  %v1923 = vadd.f32 0.0, %v1922
  %1924 = vmatmul.f32.gmra.mxu0 %v1747
  %v1925 = vpop.f32.mrf.mxu0
  %v1926 = vadd.f32 0.0, %v1925
  %1927 = vmatmul.f32.gmra.mxu0 %v1750
  %v1928 = vpop.f32.mrf.mxu0
  %v1929 = vadd.f32 0.0, %v1928
  %1930 = vmatmul.f32.gmra.mxu0 %v1753
  %v1931 = vpop.f32.mrf.mxu0
  %v1932 = vadd.f32 0.0, %v1931
  %1933 = vdwg.mxu0
  %v1934 = vadd.f32 %v1853, %v1887
  %v1935 = vadd.f32 %v1854, %v1890
  %v1936 = vadd.f32 %v1855, %v1893
  %v1937 = vadd.f32 %v1856, %v1896
  %v1938 = vadd.f32 %v1857, %v1899
  %v1939 = vadd.f32 %v1858, %v1902
  %v1940 = vadd.f32 %v1859, %v1905
  %v1941 = vadd.f32 %v1860, %v1908
  %v1942 = vadd.f32 %v1861, %v1911
  %v1943 = vadd.f32 %v1862, %v1914
  %v1944 = vadd.f32 %v1863, %v1917
  %v1945 = vadd.f32 %v1864, %v1920
  %v1946 = vadd.f32 %v1865, %v1923
  %v1947 = vadd.f32 %v1866, %v1926
  %v1948 = vadd.f32 %v1867, %v1929
  %v1949 = vadd.f32 %v1868, %v1932
  %v1950 = vtanh.pop %v1934
  %v1951 = vtanh.pop %v1935
  %v1952 = vtanh.pop %v1936
  %v1953 = vtanh.pop %v1937
  %v1954 = vtanh.pop %v1938
  %v1955 = vtanh.pop %v1939
  %v1956 = vtanh.pop %v1940
  %v1957 = vtanh.pop %v1941
  %v1958 = vtanh.pop %v1942
  %v1959 = vtanh.pop %v1943
  %v1960 = vtanh.pop %v1944
  %v1961 = vtanh.pop %v1945
  %v1962 = vtanh.pop %v1946
  %v1963 = vtanh.pop %v1947
  %v1964 = vtanh.pop %v1948
  %v1965 = vtanh.pop %v1949
  %v1967 = vsel %vm53, %v1836, 0
  %v1970 = vsel %vm53, %v1837, 0
  %v1973 = vsel %vm53, %v1838, 0
  %v1976 = vsel %vm53, %v1839, 0
  %v1979 = vsel %vm53, %v1840, 0
  %v1982 = vsel %vm53, %v1841, 0
  %v1985 = vsel %vm53, %v1842, 0
  %v1988 = vsel %vm53, %v1843, 0
  %v1991 = vsel %vm53, %v1844, 0
  %v1994 = vsel %vm53, %v1845, 0
  %v1997 = vsel %vm53, %v1846, 0
  %v2000 = vsel %vm53, %v1847, 0
  %v2003 = vsel %vm53, %v1848, 0
  %v2006 = vsel %vm53, %v1849, 0
  %v2009 = vsel %vm53, %v1850, 0
  %v2012 = vsel %vm53, %v1851, 0
  %2014 = vmatpush.msra.mxu0 0.0
  %2015 = vmatpush.msra.mxu0 0.0
  %2016 = vmatpush.msra.mxu0 0.0
  %2017 = vmatpush.msra.mxu0 0.0
  %2018 = vmatpush.msra.mxu0 0.0
  %2019 = vmatpush.msra.mxu0 0.0
  %2020 = vmatpush.msra.mxu0 0.0
  %2021 = vmatpush.msra.mxu0 0.0
  %2022 = vmatpush.msra.mxu0 0.0
  %2023 = vmatpush.msra.mxu0 0.0
  %2024 = vmatpush.msra.mxu0 0.0
  %2025 = vmatpush.msra.mxu0 0.0
  %2026 = vmatpush.msra.mxu0 %v29
  %2027 = vmatpush.msra.mxu0 %v28
  %2028 = vmatpush.msra.mxu0 %v27
  %2029 = vmatpush.msra.mxu0 %v26
  %2030 = vmatmul.f32.gmra.mxu0 %v1967
  %v2031 = vpop.f32.mrf.mxu0
  %v2032 = vadd.f32 0.0, %v2031
  %2033 = vmatmul.f32.gmra.mxu0 %v1970
  %v2034 = vpop.f32.mrf.mxu0
  %v2035 = vadd.f32 0.0, %v2034
  %2036 = vmatmul.f32.gmra.mxu0 %v1973
  %v2037 = vpop.f32.mrf.mxu0
  %v2038 = vadd.f32 0.0, %v2037
  %2039 = vmatmul.f32.gmra.mxu0 %v1976
  %v2040 = vpop.f32.mrf.mxu0
  %v2041 = vadd.f32 0.0, %v2040
  %2042 = vmatmul.f32.gmra.mxu0 %v1979
  %v2043 = vpop.f32.mrf.mxu0
  %v2044 = vadd.f32 0.0, %v2043
  %2045 = vmatmul.f32.gmra.mxu0 %v1982
  %v2046 = vpop.f32.mrf.mxu0
  %v2047 = vadd.f32 0.0, %v2046
  %2048 = vmatmul.f32.gmra.mxu0 %v1985
  %v2049 = vpop.f32.mrf.mxu0
  %v2050 = vadd.f32 0.0, %v2049
  %2051 = vmatmul.f32.gmra.mxu0 %v1988
  %v2052 = vpop.f32.mrf.mxu0
  %v2053 = vadd.f32 0.0, %v2052
  %2054 = vmatmul.f32.gmra.mxu0 %v1991
  %v2055 = vpop.f32.mrf.mxu0
  %v2056 = vadd.f32 0.0, %v2055
  %2057 = vmatmul.f32.gmra.mxu0 %v1994
  %v2058 = vpop.f32.mrf.mxu0
  %v2059 = vadd.f32 0.0, %v2058
  %2060 = vmatmul.f32.gmra.mxu0 %v1997
  %v2061 = vpop.f32.mrf.mxu0
  %v2062 = vadd.f32 0.0, %v2061
  %2063 = vmatmul.f32.gmra.mxu0 %v2000
  %v2064 = vpop.f32.mrf.mxu0
  %v2065 = vadd.f32 0.0, %v2064
  %2066 = vmatmul.f32.gmra.mxu0 %v2003
  %v2067 = vpop.f32.mrf.mxu0
  %v2068 = vadd.f32 0.0, %v2067
  %2069 = vmatmul.f32.gmra.mxu0 %v2006
  %v2070 = vpop.f32.mrf.mxu0
  %v2071 = vadd.f32 0.0, %v2070
  %2072 = vmatmul.f32.gmra.mxu0 %v2009
  %v2073 = vpop.f32.mrf.mxu0
  %v2074 = vadd.f32 0.0, %v2073
  %2075 = vmatmul.f32.gmra.mxu0 %v2012
  %v2076 = vpop.f32.mrf.mxu0
  %v2077 = vadd.f32 0.0, %v2076
  %2078 = vdwg.mxu0
  %v2080 = vsel %vm53, %v1950, 0
  %v2083 = vsel %vm53, %v1951, 0
  %v2086 = vsel %vm53, %v1952, 0
  %v2089 = vsel %vm53, %v1953, 0
  %v2092 = vsel %vm53, %v1954, 0
  %v2095 = vsel %vm53, %v1955, 0
  %v2098 = vsel %vm53, %v1956, 0
  %v2101 = vsel %vm53, %v1957, 0
  %v2104 = vsel %vm53, %v1958, 0
  %v2107 = vsel %vm53, %v1959, 0
  %v2110 = vsel %vm53, %v1960, 0
  %v2113 = vsel %vm53, %v1961, 0
  %v2116 = vsel %vm53, %v1962, 0
  %v2119 = vsel %vm53, %v1963, 0
  %v2122 = vsel %vm53, %v1964, 0
  %v2125 = vsel %vm53, %v1965, 0
  %2127 = vmatpush.msra.mxu0 0.0
  %2128 = vmatpush.msra.mxu0 0.0
  %2129 = vmatpush.msra.mxu0 0.0
  %2130 = vmatpush.msra.mxu0 0.0
  %2131 = vmatpush.msra.mxu0 0.0
  %2132 = vmatpush.msra.mxu0 0.0
  %2133 = vmatpush.msra.mxu0 0.0
  %2134 = vmatpush.msra.mxu0 0.0
  %2135 = vmatpush.msra.mxu0 0.0
  %2136 = vmatpush.msra.mxu0 0.0
  %2137 = vmatpush.msra.mxu0 0.0
  %2138 = vmatpush.msra.mxu0 0.0
  %2139 = vmatpush.msra.mxu0 %v34
  %2140 = vmatpush.msra.mxu0 %v33
  %2141 = vmatpush.msra.mxu0 %v32
  %2142 = vmatpush.msra.mxu0 %v31
  %2143 = vmatmul.f32.gmra.mxu0 %v2080
  %v2144 = vpop.f32.mrf.mxu0
  %v2145 = vadd.f32 %v2032, %v2144
  %2146 = vmatmul.f32.gmra.mxu0 %v2083
  %v2147 = vpop.f32.mrf.mxu0
  %v2148 = vadd.f32 %v2035, %v2147
  %2149 = vmatmul.f32.gmra.mxu0 %v2086
  %v2150 = vpop.f32.mrf.mxu0
  %v2151 = vadd.f32 %v2038, %v2150
  %2152 = vmatmul.f32.gmra.mxu0 %v2089
  %v2153 = vpop.f32.mrf.mxu0
  %v2154 = vadd.f32 %v2041, %v2153
  %2155 = vmatmul.f32.gmra.mxu0 %v2092
  %v2156 = vpop.f32.mrf.mxu0
  %v2157 = vadd.f32 %v2044, %v2156
  %2158 = vmatmul.f32.gmra.mxu0 %v2095
  %v2159 = vpop.f32.mrf.mxu0
  %v2160 = vadd.f32 %v2047, %v2159
  %2161 = vmatmul.f32.gmra.mxu0 %v2098
  %v2162 = vpop.f32.mrf.mxu0
  %v2163 = vadd.f32 %v2050, %v2162
  %2164 = vmatmul.f32.gmra.mxu0 %v2101
  %v2165 = vpop.f32.mrf.mxu0
  %v2166 = vadd.f32 %v2053, %v2165
  %2167 = vmatmul.f32.gmra.mxu0 %v2104
  %v2168 = vpop.f32.mrf.mxu0
  %v2169 = vadd.f32 %v2056, %v2168
  %2170 = vmatmul.f32.gmra.mxu0 %v2107
  %v2171 = vpop.f32.mrf.mxu0
  %v2172 = vadd.f32 %v2059, %v2171
  %2173 = vmatmul.f32.gmra.mxu0 %v2110
  %v2174 = vpop.f32.mrf.mxu0
  %v2175 = vadd.f32 %v2062, %v2174
  %2176 = vmatmul.f32.gmra.mxu0 %v2113
  %v2177 = vpop.f32.mrf.mxu0
  %v2178 = vadd.f32 %v2065, %v2177
  %2179 = vmatmul.f32.gmra.mxu0 %v2116
  %v2180 = vpop.f32.mrf.mxu0
  %v2181 = vadd.f32 %v2068, %v2180
  %2182 = vmatmul.f32.gmra.mxu0 %v2119
  %v2183 = vpop.f32.mrf.mxu0
  %v2184 = vadd.f32 %v2071, %v2183
  %2185 = vmatmul.f32.gmra.mxu0 %v2122
  %v2186 = vpop.f32.mrf.mxu0
  %v2187 = vadd.f32 %v2074, %v2186
  %2188 = vmatmul.f32.gmra.mxu0 %v2125
  %v2189 = vpop.f32.mrf.mxu0
  %v2190 = vadd.f32 %v2077, %v2189
  %2191 = vdwg.mxu0
  %v2192 = vadd.f32 %v2145, %v36
  %v2193 = vadd.f32 %v2148, %v36
  %v2194 = vadd.f32 %v2151, %v36
  %v2195 = vadd.f32 %v2154, %v36
  %v2196 = vadd.f32 %v2157, %v36
  %v2197 = vadd.f32 %v2160, %v36
  %v2198 = vadd.f32 %v2163, %v36
  %v2199 = vadd.f32 %v2166, %v36
  %v2200 = vadd.f32 %v2169, %v36
  %v2201 = vadd.f32 %v2172, %v36
  %v2202 = vadd.f32 %v2175, %v36
  %v2203 = vadd.f32 %v2178, %v36
  %v2204 = vadd.f32 %v2181, %v36
  %v2205 = vadd.f32 %v2184, %v36
  %v2206 = vadd.f32 %v2187, %v36
  %v2207 = vadd.f32 %v2190, %v36
  %v2208 = vtanh.pop %v2192
  %v2209 = vtanh.pop %v2193
  %v2210 = vtanh.pop %v2194
  %v2211 = vtanh.pop %v2195
  %v2212 = vtanh.pop %v2196
  %v2213 = vtanh.pop %v2197
  %v2214 = vtanh.pop %v2198
  %v2215 = vtanh.pop %v2199
  %v2216 = vtanh.pop %v2200
  %v2217 = vtanh.pop %v2201
  %v2218 = vtanh.pop %v2202
  %v2219 = vtanh.pop %v2203
  %v2220 = vtanh.pop %v2204
  %v2221 = vtanh.pop %v2205
  %v2222 = vtanh.pop %v2206
  %v2223 = vtanh.pop %v2207
  %s2224 = scalar_lea.vmem %s0, 768
  %v2225 = vld [vmem:[%s2224] sm:$0xff]
  %v2226 = vld [vmem:[%s2224 + $0x8] sm:$0xff]
  %v2227 = vld [vmem:[%s2224 + $0x10] sm:$0xff]
  %v2228 = vld [vmem:[%s2224 + $0x18] sm:$0xff]
  %v2229 = vld [vmem:[%s2224 + $0x20] sm:$0xff]
  %v2230 = vld [vmem:[%s2224 + $0x28] sm:$0xff]
  %v2231 = vld [vmem:[%s2224 + $0x30] sm:$0xff]
  %v2232 = vld [vmem:[%s2224 + $0x38] sm:$0xff]
  %v2233 = vld [vmem:[%s2224 + $0x40] sm:$0xff]
  %v2234 = vld [vmem:[%s2224 + $0x48] sm:$0xff]
  %v2235 = vld [vmem:[%s2224 + $0x50] sm:$0xff]
  %v2236 = vld [vmem:[%s2224 + $0x58] sm:$0xff]
  %v2237 = vld [vmem:[%s2224 + $0x60] sm:$0xff]
  %v2238 = vld [vmem:[%s2224 + $0x68] sm:$0xff]
  %v2239 = vld [vmem:[%s2224 + $0x70] sm:$0xff]
  %v2240 = vld [vmem:[%s2224 + $0x78] sm:$0xff]
  %2241 = vmatpush.msra.mxu0 0.0
  %2242 = vmatpush.msra.mxu0 0.0
  %2243 = vmatpush.msra.mxu0 0.0
  %2244 = vmatpush.msra.mxu0 0.0
  %2245 = vmatpush.msra.mxu0 0.0
  %2246 = vmatpush.msra.mxu0 0.0
  %2247 = vmatpush.msra.mxu0 0.0
  %2248 = vmatpush.msra.mxu0 0.0
  %2249 = vmatpush.msra.mxu0 0.0
  %2250 = vmatpush.msra.mxu0 0.0
  %2251 = vmatpush.msra.mxu0 0.0
  %2252 = vmatpush.msra.mxu0 0.0
  %2253 = vmatpush.msra.mxu0 %v24
  %2254 = vmatpush.msra.mxu0 %v23
  %2255 = vmatpush.msra.mxu0 %v22
  %2256 = vmatpush.msra.mxu0 %v21
  %2257 = vmatmul.f32.gmra.mxu0 %v2080
  %v2258 = vpop.f32.mrf.mxu0
  %v2259 = vadd.f32 0.0, %v2258
  %2260 = vmatmul.f32.gmra.mxu0 %v2083
  %v2261 = vpop.f32.mrf.mxu0
  %v2262 = vadd.f32 0.0, %v2261
  %2263 = vmatmul.f32.gmra.mxu0 %v2086
  %v2264 = vpop.f32.mrf.mxu0
  %v2265 = vadd.f32 0.0, %v2264
  %2266 = vmatmul.f32.gmra.mxu0 %v2089
  %v2267 = vpop.f32.mrf.mxu0
  %v2268 = vadd.f32 0.0, %v2267
  %2269 = vmatmul.f32.gmra.mxu0 %v2092
  %v2270 = vpop.f32.mrf.mxu0
  %v2271 = vadd.f32 0.0, %v2270
  %2272 = vmatmul.f32.gmra.mxu0 %v2095
  %v2273 = vpop.f32.mrf.mxu0
  %v2274 = vadd.f32 0.0, %v2273
  %2275 = vmatmul.f32.gmra.mxu0 %v2098
  %v2276 = vpop.f32.mrf.mxu0
  %v2277 = vadd.f32 0.0, %v2276
  %2278 = vmatmul.f32.gmra.mxu0 %v2101
  %v2279 = vpop.f32.mrf.mxu0
  %v2280 = vadd.f32 0.0, %v2279
  %2281 = vmatmul.f32.gmra.mxu0 %v2104
  %v2282 = vpop.f32.mrf.mxu0
  %v2283 = vadd.f32 0.0, %v2282
  %2284 = vmatmul.f32.gmra.mxu0 %v2107
  %v2285 = vpop.f32.mrf.mxu0
  %v2286 = vadd.f32 0.0, %v2285
  %2287 = vmatmul.f32.gmra.mxu0 %v2110
  %v2288 = vpop.f32.mrf.mxu0
  %v2289 = vadd.f32 0.0, %v2288
  %2290 = vmatmul.f32.gmra.mxu0 %v2113
  %v2291 = vpop.f32.mrf.mxu0
  %v2292 = vadd.f32 0.0, %v2291
  %2293 = vmatmul.f32.gmra.mxu0 %v2116
  %v2294 = vpop.f32.mrf.mxu0
  %v2295 = vadd.f32 0.0, %v2294
  %2296 = vmatmul.f32.gmra.mxu0 %v2119
  %v2297 = vpop.f32.mrf.mxu0
  %v2298 = vadd.f32 0.0, %v2297
  %2299 = vmatmul.f32.gmra.mxu0 %v2122
  %v2300 = vpop.f32.mrf.mxu0
  %v2301 = vadd.f32 0.0, %v2300
  %2302 = vmatmul.f32.gmra.mxu0 %v2125
  %v2303 = vpop.f32.mrf.mxu0
  %v2304 = vadd.f32 0.0, %v2303
  %2305 = vdwg.mxu0
  %v2306 = vadd.f32 %v2225, %v2259
  %v2307 = vadd.f32 %v2226, %v2262
  %v2308 = vadd.f32 %v2227, %v2265
  %v2309 = vadd.f32 %v2228, %v2268
  %v2310 = vadd.f32 %v2229, %v2271
  %v2311 = vadd.f32 %v2230, %v2274
  %v2312 = vadd.f32 %v2231, %v2277
  %v2313 = vadd.f32 %v2232, %v2280
  %v2314 = vadd.f32 %v2233, %v2283
  %v2315 = vadd.f32 %v2234, %v2286
  %v2316 = vadd.f32 %v2235, %v2289
  %v2317 = vadd.f32 %v2236, %v2292
  %v2318 = vadd.f32 %v2237, %v2295
  %v2319 = vadd.f32 %v2238, %v2298
  %v2320 = vadd.f32 %v2239, %v2301
  %v2321 = vadd.f32 %v2240, %v2304
  %v2322 = vtanh.pop %v2306
  %v2323 = vtanh.pop %v2307
  %v2324 = vtanh.pop %v2308
  %v2325 = vtanh.pop %v2309
  %v2326 = vtanh.pop %v2310
  %v2327 = vtanh.pop %v2311
  %v2328 = vtanh.pop %v2312
  %v2329 = vtanh.pop %v2313
  %v2330 = vtanh.pop %v2314
  %v2331 = vtanh.pop %v2315
  %v2332 = vtanh.pop %v2316
  %v2333 = vtanh.pop %v2317
  %v2334 = vtanh.pop %v2318
  %v2335 = vtanh.pop %v2319
  %v2336 = vtanh.pop %v2320
  %v2337 = vtanh.pop %v2321
  %v2339 = vsel %vm53, %v2208, 0
  %v2342 = vsel %vm53, %v2209, 0
  %v2345 = vsel %vm53, %v2210, 0
  %v2348 = vsel %vm53, %v2211, 0
  %v2351 = vsel %vm53, %v2212, 0
  %v2354 = vsel %vm53, %v2213, 0
  %v2357 = vsel %vm53, %v2214, 0
  %v2360 = vsel %vm53, %v2215, 0
  %v2363 = vsel %vm53, %v2216, 0
  %v2366 = vsel %vm53, %v2217, 0
  %v2369 = vsel %vm53, %v2218, 0
  %v2372 = vsel %vm53, %v2219, 0
  %v2375 = vsel %vm53, %v2220, 0
  %v2378 = vsel %vm53, %v2221, 0
  %v2381 = vsel %vm53, %v2222, 0
  %v2384 = vsel %vm53, %v2223, 0
  %2386 = vmatpush.msra.mxu0 0.0
  %2387 = vmatpush.msra.mxu0 0.0
  %2388 = vmatpush.msra.mxu0 0.0
  %2389 = vmatpush.msra.mxu0 0.0
  %2390 = vmatpush.msra.mxu0 0.0
  %2391 = vmatpush.msra.mxu0 0.0
  %2392 = vmatpush.msra.mxu0 0.0
  %2393 = vmatpush.msra.mxu0 0.0
  %2394 = vmatpush.msra.mxu0 0.0
  %2395 = vmatpush.msra.mxu0 0.0
  %2396 = vmatpush.msra.mxu0 0.0
  %2397 = vmatpush.msra.mxu0 0.0
  %2398 = vmatpush.msra.mxu0 %v29
  %2399 = vmatpush.msra.mxu0 %v28
  %2400 = vmatpush.msra.mxu0 %v27
  %2401 = vmatpush.msra.mxu0 %v26
  %2402 = vmatmul.f32.gmra.mxu0 %v2339
  %v2403 = vpop.f32.mrf.mxu0
  %v2404 = vadd.f32 0.0, %v2403
  %2405 = vmatmul.f32.gmra.mxu0 %v2342
  %v2406 = vpop.f32.mrf.mxu0
  %v2407 = vadd.f32 0.0, %v2406
  %2408 = vmatmul.f32.gmra.mxu0 %v2345
  %v2409 = vpop.f32.mrf.mxu0
  %v2410 = vadd.f32 0.0, %v2409
  %2411 = vmatmul.f32.gmra.mxu0 %v2348
  %v2412 = vpop.f32.mrf.mxu0
  %v2413 = vadd.f32 0.0, %v2412
  %2414 = vmatmul.f32.gmra.mxu0 %v2351
  %v2415 = vpop.f32.mrf.mxu0
  %v2416 = vadd.f32 0.0, %v2415
  %2417 = vmatmul.f32.gmra.mxu0 %v2354
  %v2418 = vpop.f32.mrf.mxu0
  %v2419 = vadd.f32 0.0, %v2418
  %2420 = vmatmul.f32.gmra.mxu0 %v2357
  %v2421 = vpop.f32.mrf.mxu0
  %v2422 = vadd.f32 0.0, %v2421
  %2423 = vmatmul.f32.gmra.mxu0 %v2360
  %v2424 = vpop.f32.mrf.mxu0
  %v2425 = vadd.f32 0.0, %v2424
  %2426 = vmatmul.f32.gmra.mxu0 %v2363
  %v2427 = vpop.f32.mrf.mxu0
  %v2428 = vadd.f32 0.0, %v2427
  %2429 = vmatmul.f32.gmra.mxu0 %v2366
  %v2430 = vpop.f32.mrf.mxu0
  %v2431 = vadd.f32 0.0, %v2430
  %2432 = vmatmul.f32.gmra.mxu0 %v2369
  %v2433 = vpop.f32.mrf.mxu0
  %v2434 = vadd.f32 0.0, %v2433
  %2435 = vmatmul.f32.gmra.mxu0 %v2372
  %v2436 = vpop.f32.mrf.mxu0
  %v2437 = vadd.f32 0.0, %v2436
  %2438 = vmatmul.f32.gmra.mxu0 %v2375
  %v2439 = vpop.f32.mrf.mxu0
  %v2440 = vadd.f32 0.0, %v2439
  %2441 = vmatmul.f32.gmra.mxu0 %v2378
  %v2442 = vpop.f32.mrf.mxu0
  %v2443 = vadd.f32 0.0, %v2442
  %2444 = vmatmul.f32.gmra.mxu0 %v2381
  %v2445 = vpop.f32.mrf.mxu0
  %v2446 = vadd.f32 0.0, %v2445
  %2447 = vmatmul.f32.gmra.mxu0 %v2384
  %v2448 = vpop.f32.mrf.mxu0
  %v2449 = vadd.f32 0.0, %v2448
  %2450 = vdwg.mxu0
  %v2452 = vsel %vm53, %v2322, 0
  %v2455 = vsel %vm53, %v2323, 0
  %v2458 = vsel %vm53, %v2324, 0
  %v2461 = vsel %vm53, %v2325, 0
  %v2464 = vsel %vm53, %v2326, 0
  %v2467 = vsel %vm53, %v2327, 0
  %v2470 = vsel %vm53, %v2328, 0
  %v2473 = vsel %vm53, %v2329, 0
  %v2476 = vsel %vm53, %v2330, 0
  %v2479 = vsel %vm53, %v2331, 0
  %v2482 = vsel %vm53, %v2332, 0
  %v2485 = vsel %vm53, %v2333, 0
  %v2488 = vsel %vm53, %v2334, 0
  %v2491 = vsel %vm53, %v2335, 0
  %v2494 = vsel %vm53, %v2336, 0
  %v2497 = vsel %vm53, %v2337, 0
  %2499 = vmatpush.msra.mxu0 0.0
  %2500 = vmatpush.msra.mxu0 0.0
  %2501 = vmatpush.msra.mxu0 0.0
  %2502 = vmatpush.msra.mxu0 0.0
  %2503 = vmatpush.msra.mxu0 0.0
  %2504 = vmatpush.msra.mxu0 0.0
  %2505 = vmatpush.msra.mxu0 0.0
  %2506 = vmatpush.msra.mxu0 0.0
  %2507 = vmatpush.msra.mxu0 0.0
  %2508 = vmatpush.msra.mxu0 0.0
  %2509 = vmatpush.msra.mxu0 0.0
  %2510 = vmatpush.msra.mxu0 0.0
  %2511 = vmatpush.msra.mxu0 %v34
  %2512 = vmatpush.msra.mxu0 %v33
  %2513 = vmatpush.msra.mxu0 %v32
  %2514 = vmatpush.msra.mxu0 %v31
  %2515 = vmatmul.f32.gmra.mxu0 %v2452
  %v2516 = vpop.f32.mrf.mxu0
  %v2517 = vadd.f32 %v2404, %v2516
  %2518 = vmatmul.f32.gmra.mxu0 %v2455
  %v2519 = vpop.f32.mrf.mxu0
  %v2520 = vadd.f32 %v2407, %v2519
  %2521 = vmatmul.f32.gmra.mxu0 %v2458
  %v2522 = vpop.f32.mrf.mxu0
  %v2523 = vadd.f32 %v2410, %v2522
  %2524 = vmatmul.f32.gmra.mxu0 %v2461
  %v2525 = vpop.f32.mrf.mxu0
  %v2526 = vadd.f32 %v2413, %v2525
  %2527 = vmatmul.f32.gmra.mxu0 %v2464
  %v2528 = vpop.f32.mrf.mxu0
  %v2529 = vadd.f32 %v2416, %v2528
  %2530 = vmatmul.f32.gmra.mxu0 %v2467
  %v2531 = vpop.f32.mrf.mxu0
  %v2532 = vadd.f32 %v2419, %v2531
  %2533 = vmatmul.f32.gmra.mxu0 %v2470
  %v2534 = vpop.f32.mrf.mxu0
  %v2535 = vadd.f32 %v2422, %v2534
  %2536 = vmatmul.f32.gmra.mxu0 %v2473
  %v2537 = vpop.f32.mrf.mxu0
  %v2538 = vadd.f32 %v2425, %v2537
  %2539 = vmatmul.f32.gmra.mxu0 %v2476
  %v2540 = vpop.f32.mrf.mxu0
  %v2541 = vadd.f32 %v2428, %v2540
  %2542 = vmatmul.f32.gmra.mxu0 %v2479
  %v2543 = vpop.f32.mrf.mxu0
  %v2544 = vadd.f32 %v2431, %v2543
  %2545 = vmatmul.f32.gmra.mxu0 %v2482
  %v2546 = vpop.f32.mrf.mxu0
  %v2547 = vadd.f32 %v2434, %v2546
  %2548 = vmatmul.f32.gmra.mxu0 %v2485
  %v2549 = vpop.f32.mrf.mxu0
  %v2550 = vadd.f32 %v2437, %v2549
  %2551 = vmatmul.f32.gmra.mxu0 %v2488
  %v2552 = vpop.f32.mrf.mxu0
  %v2553 = vadd.f32 %v2440, %v2552
  %2554 = vmatmul.f32.gmra.mxu0 %v2491
  %v2555 = vpop.f32.mrf.mxu0
  %v2556 = vadd.f32 %v2443, %v2555
  %2557 = vmatmul.f32.gmra.mxu0 %v2494
  %v2558 = vpop.f32.mrf.mxu0
  %v2559 = vadd.f32 %v2446, %v2558
  %2560 = vmatmul.f32.gmra.mxu0 %v2497
  %v2561 = vpop.f32.mrf.mxu0
  %v2562 = vadd.f32 %v2449, %v2561
  %2563 = vdwg.mxu0
  %v2564 = vadd.f32 %v2517, %v36
  %v2565 = vadd.f32 %v2520, %v36
  %v2566 = vadd.f32 %v2523, %v36
  %v2567 = vadd.f32 %v2526, %v36
  %v2568 = vadd.f32 %v2529, %v36
  %v2569 = vadd.f32 %v2532, %v36
  %v2570 = vadd.f32 %v2535, %v36
  %v2571 = vadd.f32 %v2538, %v36
  %v2572 = vadd.f32 %v2541, %v36
  %v2573 = vadd.f32 %v2544, %v36
  %v2574 = vadd.f32 %v2547, %v36
  %v2575 = vadd.f32 %v2550, %v36
  %v2576 = vadd.f32 %v2553, %v36
  %v2577 = vadd.f32 %v2556, %v36
  %v2578 = vadd.f32 %v2559, %v36
  %v2579 = vadd.f32 %v2562, %v36
  %v2580 = vtanh.pop %v2564
  %v2581 = vtanh.pop %v2565
  %v2582 = vtanh.pop %v2566
  %v2583 = vtanh.pop %v2567
  %v2584 = vtanh.pop %v2568
  %v2585 = vtanh.pop %v2569
  %v2586 = vtanh.pop %v2570
  %v2587 = vtanh.pop %v2571
  %v2588 = vtanh.pop %v2572
  %v2589 = vtanh.pop %v2573
  %v2590 = vtanh.pop %v2574
  %v2591 = vtanh.pop %v2575
  %v2592 = vtanh.pop %v2576
  %v2593 = vtanh.pop %v2577
  %v2594 = vtanh.pop %v2578
  %v2595 = vtanh.pop %v2579
  %s2596 = scalar_lea.vmem %s0, 896
  %v2597 = vld [vmem:[%s2596] sm:$0xff]
  %v2598 = vld [vmem:[%s2596 + $0x8] sm:$0xff]
  %v2599 = vld [vmem:[%s2596 + $0x10] sm:$0xff]
  %v2600 = vld [vmem:[%s2596 + $0x18] sm:$0xff]
  %v2601 = vld [vmem:[%s2596 + $0x20] sm:$0xff]
  %v2602 = vld [vmem:[%s2596 + $0x28] sm:$0xff]
  %v2603 = vld [vmem:[%s2596 + $0x30] sm:$0xff]
  %v2604 = vld [vmem:[%s2596 + $0x38] sm:$0xff]
  %v2605 = vld [vmem:[%s2596 + $0x40] sm:$0xff]
  %v2606 = vld [vmem:[%s2596 + $0x48] sm:$0xff]
  %v2607 = vld [vmem:[%s2596 + $0x50] sm:$0xff]
  %v2608 = vld [vmem:[%s2596 + $0x58] sm:$0xff]
  %v2609 = vld [vmem:[%s2596 + $0x60] sm:$0xff]
  %v2610 = vld [vmem:[%s2596 + $0x68] sm:$0xff]
  %v2611 = vld [vmem:[%s2596 + $0x70] sm:$0xff]
  %v2612 = vld [vmem:[%s2596 + $0x78] sm:$0xff]
  %2613 = vmatpush.msra.mxu0 0.0
  %2614 = vmatpush.msra.mxu0 0.0
  %2615 = vmatpush.msra.mxu0 0.0
  %2616 = vmatpush.msra.mxu0 0.0
  %2617 = vmatpush.msra.mxu0 0.0
  %2618 = vmatpush.msra.mxu0 0.0
  %2619 = vmatpush.msra.mxu0 0.0
  %2620 = vmatpush.msra.mxu0 0.0
  %2621 = vmatpush.msra.mxu0 0.0
  %2622 = vmatpush.msra.mxu0 0.0
  %2623 = vmatpush.msra.mxu0 0.0
  %2624 = vmatpush.msra.mxu0 0.0
  %2625 = vmatpush.msra.mxu0 %v24
  %2626 = vmatpush.msra.mxu0 %v23
  %2627 = vmatpush.msra.mxu0 %v22
  %2628 = vmatpush.msra.mxu0 %v21
  %2629 = vmatmul.f32.gmra.mxu0 %v2452
  %v2630 = vpop.f32.mrf.mxu0
  %v2631 = vadd.f32 0.0, %v2630
  %2632 = vmatmul.f32.gmra.mxu0 %v2455
  %v2633 = vpop.f32.mrf.mxu0
  %v2634 = vadd.f32 0.0, %v2633
  %2635 = vmatmul.f32.gmra.mxu0 %v2458
  %v2636 = vpop.f32.mrf.mxu0
  %v2637 = vadd.f32 0.0, %v2636
  %2638 = vmatmul.f32.gmra.mxu0 %v2461
  %v2639 = vpop.f32.mrf.mxu0
  %v2640 = vadd.f32 0.0, %v2639
  %2641 = vmatmul.f32.gmra.mxu0 %v2464
  %v2642 = vpop.f32.mrf.mxu0
  %v2643 = vadd.f32 0.0, %v2642
  %2644 = vmatmul.f32.gmra.mxu0 %v2467
  %v2645 = vpop.f32.mrf.mxu0
  %v2646 = vadd.f32 0.0, %v2645
  %2647 = vmatmul.f32.gmra.mxu0 %v2470
  %v2648 = vpop.f32.mrf.mxu0
  %v2649 = vadd.f32 0.0, %v2648
  %2650 = vmatmul.f32.gmra.mxu0 %v2473
  %v2651 = vpop.f32.mrf.mxu0
  %v2652 = vadd.f32 0.0, %v2651
  %2653 = vmatmul.f32.gmra.mxu0 %v2476
  %v2654 = vpop.f32.mrf.mxu0
  %v2655 = vadd.f32 0.0, %v2654
  %2656 = vmatmul.f32.gmra.mxu0 %v2479
  %v2657 = vpop.f32.mrf.mxu0
  %v2658 = vadd.f32 0.0, %v2657
  %2659 = vmatmul.f32.gmra.mxu0 %v2482
  %v2660 = vpop.f32.mrf.mxu0
  %v2661 = vadd.f32 0.0, %v2660
  %2662 = vmatmul.f32.gmra.mxu0 %v2485
  %v2663 = vpop.f32.mrf.mxu0
  %v2664 = vadd.f32 0.0, %v2663
  %2665 = vmatmul.f32.gmra.mxu0 %v2488
  %v2666 = vpop.f32.mrf.mxu0
  %v2667 = vadd.f32 0.0, %v2666
  %2668 = vmatmul.f32.gmra.mxu0 %v2491
  %v2669 = vpop.f32.mrf.mxu0
  %v2670 = vadd.f32 0.0, %v2669
  %2671 = vmatmul.f32.gmra.mxu0 %v2494
  %v2672 = vpop.f32.mrf.mxu0
  %v2673 = vadd.f32 0.0, %v2672
  %2674 = vmatmul.f32.gmra.mxu0 %v2497
  %v2675 = vpop.f32.mrf.mxu0
  %v2676 = vadd.f32 0.0, %v2675
  %2677 = vdwg.mxu0
  %v2678 = vadd.f32 %v2597, %v2631
  %v2679 = vadd.f32 %v2598, %v2634
  %v2680 = vadd.f32 %v2599, %v2637
  %v2681 = vadd.f32 %v2600, %v2640
  %v2682 = vadd.f32 %v2601, %v2643
  %v2683 = vadd.f32 %v2602, %v2646
  %v2684 = vadd.f32 %v2603, %v2649
  %v2685 = vadd.f32 %v2604, %v2652
  %v2686 = vadd.f32 %v2605, %v2655
  %v2687 = vadd.f32 %v2606, %v2658
  %v2688 = vadd.f32 %v2607, %v2661
  %v2689 = vadd.f32 %v2608, %v2664
  %v2690 = vadd.f32 %v2609, %v2667
  %v2691 = vadd.f32 %v2610, %v2670
  %v2692 = vadd.f32 %v2611, %v2673
  %v2693 = vadd.f32 %v2612, %v2676
  %v2694 = vtanh.pop %v2678
  %v2695 = vtanh.pop %v2679
  %v2696 = vtanh.pop %v2680
  %v2697 = vtanh.pop %v2681
  %v2698 = vtanh.pop %v2682
  %v2699 = vtanh.pop %v2683
  %v2700 = vtanh.pop %v2684
  %v2701 = vtanh.pop %v2685
  %v2702 = vtanh.pop %v2686
  %v2703 = vtanh.pop %v2687
  %v2704 = vtanh.pop %v2688
  %v2705 = vtanh.pop %v2689
  %v2706 = vtanh.pop %v2690
  %v2707 = vtanh.pop %v2691
  %v2708 = vtanh.pop %v2692
  %v2709 = vtanh.pop %v2693
  %v2711 = vsel %vm53, %v2580, 0
  %v2714 = vsel %vm53, %v2581, 0
  %v2717 = vsel %vm53, %v2582, 0
  %v2720 = vsel %vm53, %v2583, 0
  %v2723 = vsel %vm53, %v2584, 0
  %v2726 = vsel %vm53, %v2585, 0
  %v2729 = vsel %vm53, %v2586, 0
  %v2732 = vsel %vm53, %v2587, 0
  %v2735 = vsel %vm53, %v2588, 0
  %v2738 = vsel %vm53, %v2589, 0
  %v2741 = vsel %vm53, %v2590, 0
  %v2744 = vsel %vm53, %v2591, 0
  %v2747 = vsel %vm53, %v2592, 0
  %v2750 = vsel %vm53, %v2593, 0
  %v2753 = vsel %vm53, %v2594, 0
  %v2756 = vsel %vm53, %v2595, 0
  %2758 = vmatpush.msra.mxu0 0.0
  %2759 = vmatpush.msra.mxu0 0.0
  %2760 = vmatpush.msra.mxu0 0.0
  %2761 = vmatpush.msra.mxu0 0.0
  %2762 = vmatpush.msra.mxu0 0.0
  %2763 = vmatpush.msra.mxu0 0.0
  %2764 = vmatpush.msra.mxu0 0.0
  %2765 = vmatpush.msra.mxu0 0.0
  %2766 = vmatpush.msra.mxu0 0.0
  %2767 = vmatpush.msra.mxu0 0.0
  %2768 = vmatpush.msra.mxu0 0.0
  %2769 = vmatpush.msra.mxu0 0.0
  %2770 = vmatpush.msra.mxu0 %v29
  %2771 = vmatpush.msra.mxu0 %v28
  %2772 = vmatpush.msra.mxu0 %v27
  %2773 = vmatpush.msra.mxu0 %v26
  %2774 = vmatmul.f32.gmra.mxu0 %v2711
  %v2775 = vpop.f32.mrf.mxu0
  %v2776 = vadd.f32 0.0, %v2775
  %2777 = vmatmul.f32.gmra.mxu0 %v2714
  %v2778 = vpop.f32.mrf.mxu0
  %v2779 = vadd.f32 0.0, %v2778
  %2780 = vmatmul.f32.gmra.mxu0 %v2717
  %v2781 = vpop.f32.mrf.mxu0
  %v2782 = vadd.f32 0.0, %v2781
  %2783 = vmatmul.f32.gmra.mxu0 %v2720
  %v2784 = vpop.f32.mrf.mxu0
  %v2785 = vadd.f32 0.0, %v2784
  %2786 = vmatmul.f32.gmra.mxu0 %v2723
  %v2787 = vpop.f32.mrf.mxu0
  %v2788 = vadd.f32 0.0, %v2787
  %2789 = vmatmul.f32.gmra.mxu0 %v2726
  %v2790 = vpop.f32.mrf.mxu0
  %v2791 = vadd.f32 0.0, %v2790
  %2792 = vmatmul.f32.gmra.mxu0 %v2729
  %v2793 = vpop.f32.mrf.mxu0
  %v2794 = vadd.f32 0.0, %v2793
  %2795 = vmatmul.f32.gmra.mxu0 %v2732
  %v2796 = vpop.f32.mrf.mxu0
  %v2797 = vadd.f32 0.0, %v2796
  %2798 = vmatmul.f32.gmra.mxu0 %v2735
  %v2799 = vpop.f32.mrf.mxu0
  %v2800 = vadd.f32 0.0, %v2799
  %2801 = vmatmul.f32.gmra.mxu0 %v2738
  %v2802 = vpop.f32.mrf.mxu0
  %v2803 = vadd.f32 0.0, %v2802
  %2804 = vmatmul.f32.gmra.mxu0 %v2741
  %v2805 = vpop.f32.mrf.mxu0
  %v2806 = vadd.f32 0.0, %v2805
  %2807 = vmatmul.f32.gmra.mxu0 %v2744
  %v2808 = vpop.f32.mrf.mxu0
  %v2809 = vadd.f32 0.0, %v2808
  %2810 = vmatmul.f32.gmra.mxu0 %v2747
  %v2811 = vpop.f32.mrf.mxu0
  %v2812 = vadd.f32 0.0, %v2811
  %2813 = vmatmul.f32.gmra.mxu0 %v2750
  %v2814 = vpop.f32.mrf.mxu0
  %v2815 = vadd.f32 0.0, %v2814
  %2816 = vmatmul.f32.gmra.mxu0 %v2753
  %v2817 = vpop.f32.mrf.mxu0
  %v2818 = vadd.f32 0.0, %v2817
  %2819 = vmatmul.f32.gmra.mxu0 %v2756
  %v2820 = vpop.f32.mrf.mxu0
  %v2821 = vadd.f32 0.0, %v2820
  %2822 = vdwg.mxu0
  %v2824 = vsel %vm53, %v2694, 0
  %v2827 = vsel %vm53, %v2695, 0
  %v2830 = vsel %vm53, %v2696, 0
  %v2833 = vsel %vm53, %v2697, 0
  %v2836 = vsel %vm53, %v2698, 0
  %v2839 = vsel %vm53, %v2699, 0
  %v2842 = vsel %vm53, %v2700, 0
  %v2845 = vsel %vm53, %v2701, 0
  %v2848 = vsel %vm53, %v2702, 0
  %v2851 = vsel %vm53, %v2703, 0
  %v2854 = vsel %vm53, %v2704, 0
  %v2857 = vsel %vm53, %v2705, 0
  %v2860 = vsel %vm53, %v2706, 0
  %v2863 = vsel %vm53, %v2707, 0
  %v2866 = vsel %vm53, %v2708, 0
  %v2869 = vsel %vm53, %v2709, 0
  %2871 = vmatpush.msra.mxu0 0.0
  %2872 = vmatpush.msra.mxu0 0.0
  %2873 = vmatpush.msra.mxu0 0.0
  %2874 = vmatpush.msra.mxu0 0.0
  %2875 = vmatpush.msra.mxu0 0.0
  %2876 = vmatpush.msra.mxu0 0.0
  %2877 = vmatpush.msra.mxu0 0.0
  %2878 = vmatpush.msra.mxu0 0.0
  %2879 = vmatpush.msra.mxu0 0.0
  %2880 = vmatpush.msra.mxu0 0.0
  %2881 = vmatpush.msra.mxu0 0.0
  %2882 = vmatpush.msra.mxu0 0.0
  %2883 = vmatpush.msra.mxu0 %v34
  %2884 = vmatpush.msra.mxu0 %v33
  %2885 = vmatpush.msra.mxu0 %v32
  %2886 = vmatpush.msra.mxu0 %v31
  %2887 = vmatmul.f32.gmra.mxu0 %v2824
  %v2888 = vpop.f32.mrf.mxu0
  %v2889 = vadd.f32 %v2776, %v2888
  %2890 = vmatmul.f32.gmra.mxu0 %v2827
  %v2891 = vpop.f32.mrf.mxu0
  %v2892 = vadd.f32 %v2779, %v2891
  %2893 = vmatmul.f32.gmra.mxu0 %v2830
  %v2894 = vpop.f32.mrf.mxu0
  %v2895 = vadd.f32 %v2782, %v2894
  %2896 = vmatmul.f32.gmra.mxu0 %v2833
  %v2897 = vpop.f32.mrf.mxu0
  %v2898 = vadd.f32 %v2785, %v2897
  %2899 = vmatmul.f32.gmra.mxu0 %v2836
  %v2900 = vpop.f32.mrf.mxu0
  %v2901 = vadd.f32 %v2788, %v2900
  %2902 = vmatmul.f32.gmra.mxu0 %v2839
  %v2903 = vpop.f32.mrf.mxu0
  %v2904 = vadd.f32 %v2791, %v2903
  %2905 = vmatmul.f32.gmra.mxu0 %v2842
  %v2906 = vpop.f32.mrf.mxu0
  %v2907 = vadd.f32 %v2794, %v2906
  %2908 = vmatmul.f32.gmra.mxu0 %v2845
  %v2909 = vpop.f32.mrf.mxu0
  %v2910 = vadd.f32 %v2797, %v2909
  %2911 = vmatmul.f32.gmra.mxu0 %v2848
  %v2912 = vpop.f32.mrf.mxu0
  %v2913 = vadd.f32 %v2800, %v2912
  %2914 = vmatmul.f32.gmra.mxu0 %v2851
  %v2915 = vpop.f32.mrf.mxu0
  %v2916 = vadd.f32 %v2803, %v2915
  %2917 = vmatmul.f32.gmra.mxu0 %v2854
  %v2918 = vpop.f32.mrf.mxu0
  %v2919 = vadd.f32 %v2806, %v2918
  %2920 = vmatmul.f32.gmra.mxu0 %v2857
  %v2921 = vpop.f32.mrf.mxu0
  %v2922 = vadd.f32 %v2809, %v2921
  %2923 = vmatmul.f32.gmra.mxu0 %v2860
  %v2924 = vpop.f32.mrf.mxu0
  %v2925 = vadd.f32 %v2812, %v2924
  %2926 = vmatmul.f32.gmra.mxu0 %v2863
  %v2927 = vpop.f32.mrf.mxu0
  %v2928 = vadd.f32 %v2815, %v2927
  %2929 = vmatmul.f32.gmra.mxu0 %v2866
  %v2930 = vpop.f32.mrf.mxu0
  %v2931 = vadd.f32 %v2818, %v2930
  %2932 = vmatmul.f32.gmra.mxu0 %v2869
  %v2933 = vpop.f32.mrf.mxu0
  %v2934 = vadd.f32 %v2821, %v2933
  %2935 = vdwg.mxu0
  %v2936 = vadd.f32 %v2889, %v36
  %v2937 = vadd.f32 %v2892, %v36
  %v2938 = vadd.f32 %v2895, %v36
  %v2939 = vadd.f32 %v2898, %v36
  %v2940 = vadd.f32 %v2901, %v36
  %v2941 = vadd.f32 %v2904, %v36
  %v2942 = vadd.f32 %v2907, %v36
  %v2943 = vadd.f32 %v2910, %v36
  %v2944 = vadd.f32 %v2913, %v36
  %v2945 = vadd.f32 %v2916, %v36
  %v2946 = vadd.f32 %v2919, %v36
  %v2947 = vadd.f32 %v2922, %v36
  %v2948 = vadd.f32 %v2925, %v36
  %v2949 = vadd.f32 %v2928, %v36
  %v2950 = vadd.f32 %v2931, %v36
  %v2951 = vadd.f32 %v2934, %v36
  %v2952 = vtanh.pop %v2936
  %v2953 = vtanh.pop %v2937
  %v2954 = vtanh.pop %v2938
  %v2955 = vtanh.pop %v2939
  %v2956 = vtanh.pop %v2940
  %v2957 = vtanh.pop %v2941
  %v2958 = vtanh.pop %v2942
  %v2959 = vtanh.pop %v2943
  %v2960 = vtanh.pop %v2944
  %v2961 = vtanh.pop %v2945
  %v2962 = vtanh.pop %v2946
  %v2963 = vtanh.pop %v2947
  %v2964 = vtanh.pop %v2948
  %v2965 = vtanh.pop %v2949
  %v2966 = vtanh.pop %v2950
  %v2967 = vtanh.pop %v2951
  %v2968 = vld [vmem:[%s3] sm:$0x1]
  %v2970 = vperm.slane %v2968, 0
  %v2972 = vmul.f32 %v2952, %v2970
  %v2973 = vmul.f32 %v2953, %v2970
  %v2974 = vmul.f32 %v2954, %v2970
  %v2975 = vmul.f32 %v2955, %v2970
  %v2976 = vmul.f32 %v2956, %v2970
  %v2977 = vmul.f32 %v2957, %v2970
  %v2978 = vmul.f32 %v2958, %v2970
  %v2979 = vmul.f32 %v2959, %v2970
  %v2980 = vmul.f32 %v2960, %v2970
  %v2981 = vmul.f32 %v2961, %v2970
  %v2982 = vmul.f32 %v2962, %v2970
  %v2983 = vmul.f32 %v2963, %v2970
  %v2984 = vmul.f32 %v2964, %v2970
  %v2985 = vmul.f32 %v2965, %v2970
  %v2986 = vmul.f32 %v2966, %v2970
  %v2987 = vmul.f32 %v2967, %v2970
  %v2988 = vsel %vm53, %v2972, 0.0
  %2989 = vadd.xlane.f32.xlu0 %v2988
  %v2990 = vpop.xlane.xlu0 %2989
  %v2991 = vsel %vm53, %v2973, 0.0
  %2992 = vadd.xlane.f32.xlu0 %v2991
  %v2993 = vpop.xlane.xlu0 %2992
  %v2994 = vsel %vm53, %v2974, 0.0
  %2995 = vadd.xlane.f32.xlu0 %v2994
  %v2996 = vpop.xlane.xlu0 %2995
  %v2997 = vsel %vm53, %v2975, 0.0
  %2998 = vadd.xlane.f32.xlu0 %v2997
  %v2999 = vpop.xlane.xlu0 %2998
  %v3000 = vsel %vm53, %v2976, 0.0
  %3001 = vadd.xlane.f32.xlu0 %v3000
  %v3002 = vpop.xlane.xlu0 %3001
  %v3003 = vsel %vm53, %v2977, 0.0
  %3004 = vadd.xlane.f32.xlu0 %v3003
  %v3005 = vpop.xlane.xlu0 %3004
  %v3006 = vsel %vm53, %v2978, 0.0
  %3007 = vadd.xlane.f32.xlu0 %v3006
  %v3008 = vpop.xlane.xlu0 %3007
  %v3009 = vsel %vm53, %v2979, 0.0
  %3010 = vadd.xlane.f32.xlu0 %v3009
  %v3011 = vpop.xlane.xlu0 %3010
  %v3012 = vsel %vm53, %v2980, 0.0
  %3013 = vadd.xlane.f32.xlu0 %v3012
  %v3014 = vpop.xlane.xlu0 %3013
  %v3015 = vsel %vm53, %v2981, 0.0
  %3016 = vadd.xlane.f32.xlu0 %v3015
  %v3017 = vpop.xlane.xlu0 %3016
  %v3018 = vsel %vm53, %v2982, 0.0
  %3019 = vadd.xlane.f32.xlu0 %v3018
  %v3020 = vpop.xlane.xlu0 %3019
  %v3021 = vsel %vm53, %v2983, 0.0
  %3022 = vadd.xlane.f32.xlu0 %v3021
  %v3023 = vpop.xlane.xlu0 %3022
  %v3024 = vsel %vm53, %v2984, 0.0
  %3025 = vadd.xlane.f32.xlu0 %v3024
  %v3026 = vpop.xlane.xlu0 %3025
  %v3027 = vsel %vm53, %v2985, 0.0
  %3028 = vadd.xlane.f32.xlu0 %v3027
  %v3029 = vpop.xlane.xlu0 %3028
  %v3030 = vsel %vm53, %v2986, 0.0
  %3031 = vadd.xlane.f32.xlu0 %v3030
  %v3032 = vpop.xlane.xlu0 %3031
  %v3033 = vsel %vm53, %v2987, 0.0
  %3034 = vadd.xlane.f32.xlu0 %v3033
  %v3035 = vpop.xlane.xlu0 %3034
  %s3036 = sld [smem:[#allocation2]]
  %v3037 = vstv %s3036
  %v3038 = vadd.f32 %v2990, %v3037
  %v3039 = vadd.f32 %v2993, %v3037
  %v3040 = vadd.f32 %v2996, %v3037
  %v3041 = vadd.f32 %v2999, %v3037
  %v3042 = vadd.f32 %v3002, %v3037
  %v3043 = vadd.f32 %v3005, %v3037
  %v3044 = vadd.f32 %v3008, %v3037
  %v3045 = vadd.f32 %v3011, %v3037
  %v3046 = vadd.f32 %v3014, %v3037
  %v3047 = vadd.f32 %v3017, %v3037
  %v3048 = vadd.f32 %v3020, %v3037
  %v3049 = vadd.f32 %v3023, %v3037
  %v3050 = vadd.f32 %v3026, %v3037
  %v3051 = vadd.f32 %v3029, %v3037
  %v3052 = vadd.f32 %v3032, %v3037
  %v3053 = vadd.f32 %v3035, %v3037
  %v3054 = vxor.u32 %v3038, 2147483648
  %v3055 = vxor.u32 %v3039, 2147483648
  %v3056 = vxor.u32 %v3040, 2147483648
  %v3057 = vxor.u32 %v3041, 2147483648
  %v3058 = vxor.u32 %v3042, 2147483648
  %v3059 = vxor.u32 %v3043, 2147483648
  %v3060 = vxor.u32 %v3044, 2147483648
  %v3061 = vxor.u32 %v3045, 2147483648
  %v3062 = vxor.u32 %v3046, 2147483648
  %v3063 = vxor.u32 %v3047, 2147483648
  %v3064 = vxor.u32 %v3048, 2147483648
  %v3065 = vxor.u32 %v3049, 2147483648
  %v3066 = vxor.u32 %v3050, 2147483648
  %v3067 = vxor.u32 %v3051, 2147483648
  %v3068 = vxor.u32 %v3052, 2147483648
  %v3069 = vxor.u32 %v3053, 2147483648
  %v3070 = vmul.f32 %v3054, 1.442695
  %v3071 = vpow.pop %v3070
  %v3072 = vmul.f32 %v3055, 1.442695
  %v3073 = vpow.pop %v3072
  %v3074 = vmul.f32 %v3056, 1.442695
  %v3075 = vpow.pop %v3074
  %v3076 = vmul.f32 %v3057, 1.442695
  %v3077 = vpow.pop %v3076
  %v3078 = vmul.f32 %v3058, 1.442695
  %v3079 = vpow.pop %v3078
  %v3080 = vmul.f32 %v3059, 1.442695
  %v3081 = vpow.pop %v3080
  %v3082 = vmul.f32 %v3060, 1.442695
  %v3083 = vpow.pop %v3082
  %v3084 = vmul.f32 %v3061, 1.442695
  %v3085 = vpow.pop %v3084
  %v3086 = vmul.f32 %v3062, 1.442695
  %v3087 = vpow.pop %v3086
  %v3088 = vmul.f32 %v3063, 1.442695
  %v3089 = vpow.pop %v3088
  %v3090 = vmul.f32 %v3064, 1.442695
  %v3091 = vpow.pop %v3090
  %v3092 = vmul.f32 %v3065, 1.442695
  %v3093 = vpow.pop %v3092
  %v3094 = vmul.f32 %v3066, 1.442695
  %v3095 = vpow.pop %v3094
  %v3096 = vmul.f32 %v3067, 1.442695
  %v3097 = vpow.pop %v3096
  %v3098 = vmul.f32 %v3068, 1.442695
  %v3099 = vpow.pop %v3098
  %v3100 = vmul.f32 %v3069, 1.442695
  %v3101 = vpow.pop %v3100
  %v3102 = vadd.f32 %v3071, 1.0
  %v3103 = vadd.f32 %v3073, 1.0
  %v3104 = vadd.f32 %v3075, 1.0
  %v3105 = vadd.f32 %v3077, 1.0
  %v3106 = vadd.f32 %v3079, 1.0
  %v3107 = vadd.f32 %v3081, 1.0
  %v3108 = vadd.f32 %v3083, 1.0
  %v3109 = vadd.f32 %v3085, 1.0
  %v3110 = vadd.f32 %v3087, 1.0
  %v3111 = vadd.f32 %v3089, 1.0
  %v3112 = vadd.f32 %v3091, 1.0
  %v3113 = vadd.f32 %v3093, 1.0
  %v3114 = vadd.f32 %v3095, 1.0
  %v3115 = vadd.f32 %v3097, 1.0
  %v3116 = vadd.f32 %v3099, 1.0
  %v3117 = vadd.f32 %v3101, 1.0
  %v3118 = vrcp.pop %v3102
  %v3119 = vmul.f32 %v3102, %v3118
  %v3120 = vsub.f32 1.0, %v3119
  %v3121 = vmul.f32 %v3118, %v3120
  %v3122 = vadd.f32 %v3118, %v3121
  %vm3123 = vweird.f32 %v3102
  %vm3124 = vweird.f32 %v3118
  %vm3125 = vmor %vm3123, %vm3124
  %v3126 = vsel %vm3125, %v3118, %v3122
  %v3127 = vand.u32 2147483647, %v3102
  %vm3128 = vcmp.eq.f32.partialorder %v3127, 8.507059e+37
  %v3129 = vand.u32 %v3102, 2147483648
  %v3130 = vor.u32 1.1754944e-38, %v3129
  %v3131 = vsel %vm3128, %v3130, %v3126
  %v3132 = vmul.f32 1.0, %v3131
  %v3133 = vrcp.pop %v3103
  %v3134 = vmul.f32 %v3103, %v3133
  %v3135 = vsub.f32 1.0, %v3134
  %v3136 = vmul.f32 %v3133, %v3135
  %v3137 = vadd.f32 %v3133, %v3136
  %vm3138 = vweird.f32 %v3103
  %vm3139 = vweird.f32 %v3133
  %vm3140 = vmor %vm3138, %vm3139
  %v3141 = vsel %vm3140, %v3133, %v3137
  %v3142 = vand.u32 2147483647, %v3103
  %vm3143 = vcmp.eq.f32.partialorder %v3142, 8.507059e+37
  %v3144 = vand.u32 %v3103, 2147483648
  %v3145 = vor.u32 1.1754944e-38, %v3144
  %v3146 = vsel %vm3143, %v3145, %v3141
  %v3147 = vmul.f32 1.0, %v3146
  %v3148 = vrcp.pop %v3104
  %v3149 = vmul.f32 %v3104, %v3148
  %v3150 = vsub.f32 1.0, %v3149
  %v3151 = vmul.f32 %v3148, %v3150
  %v3152 = vadd.f32 %v3148, %v3151
  %vm3153 = vweird.f32 %v3104
  %vm3154 = vweird.f32 %v3148
  %vm3155 = vmor %vm3153, %vm3154
  %v3156 = vsel %vm3155, %v3148, %v3152
  %v3157 = vand.u32 2147483647, %v3104
  %vm3158 = vcmp.eq.f32.partialorder %v3157, 8.507059e+37
  %v3159 = vand.u32 %v3104, 2147483648
  %v3160 = vor.u32 1.1754944e-38, %v3159
  %v3161 = vsel %vm3158, %v3160, %v3156
  %v3162 = vmul.f32 1.0, %v3161
  %v3163 = vrcp.pop %v3105
  %v3164 = vmul.f32 %v3105, %v3163
  %v3165 = vsub.f32 1.0, %v3164
  %v3166 = vmul.f32 %v3163, %v3165
  %v3167 = vadd.f32 %v3163, %v3166
  %vm3168 = vweird.f32 %v3105
  %vm3169 = vweird.f32 %v3163
  %vm3170 = vmor %vm3168, %vm3169
  %v3171 = vsel %vm3170, %v3163, %v3167
  %v3172 = vand.u32 2147483647, %v3105
  %vm3173 = vcmp.eq.f32.partialorder %v3172, 8.507059e+37
  %v3174 = vand.u32 %v3105, 2147483648
  %v3175 = vor.u32 1.1754944e-38, %v3174
  %v3176 = vsel %vm3173, %v3175, %v3171
  %v3177 = vmul.f32 1.0, %v3176
  %v3178 = vrcp.pop %v3106
  %v3179 = vmul.f32 %v3106, %v3178
  %v3180 = vsub.f32 1.0, %v3179
  %v3181 = vmul.f32 %v3178, %v3180
  %v3182 = vadd.f32 %v3178, %v3181
  %vm3183 = vweird.f32 %v3106
  %vm3184 = vweird.f32 %v3178
  %vm3185 = vmor %vm3183, %vm3184
  %v3186 = vsel %vm3185, %v3178, %v3182
  %v3187 = vand.u32 2147483647, %v3106
  %vm3188 = vcmp.eq.f32.partialorder %v3187, 8.507059e+37
  %v3189 = vand.u32 %v3106, 2147483648
  %v3190 = vor.u32 1.1754944e-38, %v3189
  %v3191 = vsel %vm3188, %v3190, %v3186
  %v3192 = vmul.f32 1.0, %v3191
  %v3193 = vrcp.pop %v3107
  %v3194 = vmul.f32 %v3107, %v3193
  %v3195 = vsub.f32 1.0, %v3194
  %v3196 = vmul.f32 %v3193, %v3195
  %v3197 = vadd.f32 %v3193, %v3196
  %vm3198 = vweird.f32 %v3107
  %vm3199 = vweird.f32 %v3193
  %vm3200 = vmor %vm3198, %vm3199
  %v3201 = vsel %vm3200, %v3193, %v3197
  %v3202 = vand.u32 2147483647, %v3107
  %vm3203 = vcmp.eq.f32.partialorder %v3202, 8.507059e+37
  %v3204 = vand.u32 %v3107, 2147483648
  %v3205 = vor.u32 1.1754944e-38, %v3204
  %v3206 = vsel %vm3203, %v3205, %v3201
  %v3207 = vmul.f32 1.0, %v3206
  %v3208 = vrcp.pop %v3108
  %v3209 = vmul.f32 %v3108, %v3208
  %v3210 = vsub.f32 1.0, %v3209
  %v3211 = vmul.f32 %v3208, %v3210
  %v3212 = vadd.f32 %v3208, %v3211
  %vm3213 = vweird.f32 %v3108
  %vm3214 = vweird.f32 %v3208
  %vm3215 = vmor %vm3213, %vm3214
  %v3216 = vsel %vm3215, %v3208, %v3212
  %v3217 = vand.u32 2147483647, %v3108
  %vm3218 = vcmp.eq.f32.partialorder %v3217, 8.507059e+37
  %v3219 = vand.u32 %v3108, 2147483648
  %v3220 = vor.u32 1.1754944e-38, %v3219
  %v3221 = vsel %vm3218, %v3220, %v3216
  %v3222 = vmul.f32 1.0, %v3221
  %v3223 = vrcp.pop %v3109
  %v3224 = vmul.f32 %v3109, %v3223
  %v3225 = vsub.f32 1.0, %v3224
  %v3226 = vmul.f32 %v3223, %v3225
  %v3227 = vadd.f32 %v3223, %v3226
  %vm3228 = vweird.f32 %v3109
  %vm3229 = vweird.f32 %v3223
  %vm3230 = vmor %vm3228, %vm3229
  %v3231 = vsel %vm3230, %v3223, %v3227
  %v3232 = vand.u32 2147483647, %v3109
  %vm3233 = vcmp.eq.f32.partialorder %v3232, 8.507059e+37
  %v3234 = vand.u32 %v3109, 2147483648
  %v3235 = vor.u32 1.1754944e-38, %v3234
  %v3236 = vsel %vm3233, %v3235, %v3231
  %v3237 = vmul.f32 1.0, %v3236
  %v3238 = vrcp.pop %v3110
  %v3239 = vmul.f32 %v3110, %v3238
  %v3240 = vsub.f32 1.0, %v3239
  %v3241 = vmul.f32 %v3238, %v3240
  %v3242 = vadd.f32 %v3238, %v3241
  %vm3243 = vweird.f32 %v3110
  %vm3244 = vweird.f32 %v3238
  %vm3245 = vmor %vm3243, %vm3244
  %v3246 = vsel %vm3245, %v3238, %v3242
  %v3247 = vand.u32 2147483647, %v3110
  %vm3248 = vcmp.eq.f32.partialorder %v3247, 8.507059e+37
  %v3249 = vand.u32 %v3110, 2147483648
  %v3250 = vor.u32 1.1754944e-38, %v3249
  %v3251 = vsel %vm3248, %v3250, %v3246
  %v3252 = vmul.f32 1.0, %v3251
  %v3253 = vrcp.pop %v3111
  %v3254 = vmul.f32 %v3111, %v3253
  %v3255 = vsub.f32 1.0, %v3254
  %v3256 = vmul.f32 %v3253, %v3255
  %v3257 = vadd.f32 %v3253, %v3256
  %vm3258 = vweird.f32 %v3111
  %vm3259 = vweird.f32 %v3253
  %vm3260 = vmor %vm3258, %vm3259
  %v3261 = vsel %vm3260, %v3253, %v3257
  %v3262 = vand.u32 2147483647, %v3111
  %vm3263 = vcmp.eq.f32.partialorder %v3262, 8.507059e+37
  %v3264 = vand.u32 %v3111, 2147483648
  %v3265 = vor.u32 1.1754944e-38, %v3264
  %v3266 = vsel %vm3263, %v3265, %v3261
  %v3267 = vmul.f32 1.0, %v3266
  %v3268 = vrcp.pop %v3112
  %v3269 = vmul.f32 %v3112, %v3268
  %v3270 = vsub.f32 1.0, %v3269
  %v3271 = vmul.f32 %v3268, %v3270
  %v3272 = vadd.f32 %v3268, %v3271
  %vm3273 = vweird.f32 %v3112
  %vm3274 = vweird.f32 %v3268
  %vm3275 = vmor %vm3273, %vm3274
  %v3276 = vsel %vm3275, %v3268, %v3272
  %v3277 = vand.u32 2147483647, %v3112
  %vm3278 = vcmp.eq.f32.partialorder %v3277, 8.507059e+37
  %v3279 = vand.u32 %v3112, 2147483648
  %v3280 = vor.u32 1.1754944e-38, %v3279
  %v3281 = vsel %vm3278, %v3280, %v3276
  %v3282 = vmul.f32 1.0, %v3281
  %v3283 = vrcp.pop %v3113
  %v3284 = vmul.f32 %v3113, %v3283
  %v3285 = vsub.f32 1.0, %v3284
  %v3286 = vmul.f32 %v3283, %v3285
  %v3287 = vadd.f32 %v3283, %v3286
  %vm3288 = vweird.f32 %v3113
  %vm3289 = vweird.f32 %v3283
  %vm3290 = vmor %vm3288, %vm3289
  %v3291 = vsel %vm3290, %v3283, %v3287
  %v3292 = vand.u32 2147483647, %v3113
  %vm3293 = vcmp.eq.f32.partialorder %v3292, 8.507059e+37
  %v3294 = vand.u32 %v3113, 2147483648
  %v3295 = vor.u32 1.1754944e-38, %v3294
  %v3296 = vsel %vm3293, %v3295, %v3291
  %v3297 = vmul.f32 1.0, %v3296
  %v3298 = vrcp.pop %v3114
  %v3299 = vmul.f32 %v3114, %v3298
  %v3300 = vsub.f32 1.0, %v3299
  %v3301 = vmul.f32 %v3298, %v3300
  %v3302 = vadd.f32 %v3298, %v3301
  %vm3303 = vweird.f32 %v3114
  %vm3304 = vweird.f32 %v3298
  %vm3305 = vmor %vm3303, %vm3304
  %v3306 = vsel %vm3305, %v3298, %v3302
  %v3307 = vand.u32 2147483647, %v3114
  %vm3308 = vcmp.eq.f32.partialorder %v3307, 8.507059e+37
  %v3309 = vand.u32 %v3114, 2147483648
  %v3310 = vor.u32 1.1754944e-38, %v3309
  %v3311 = vsel %vm3308, %v3310, %v3306
  %v3312 = vmul.f32 1.0, %v3311
  %v3313 = vrcp.pop %v3115
  %v3314 = vmul.f32 %v3115, %v3313
  %v3315 = vsub.f32 1.0, %v3314
  %v3316 = vmul.f32 %v3313, %v3315
  %v3317 = vadd.f32 %v3313, %v3316
  %vm3318 = vweird.f32 %v3115
  %vm3319 = vweird.f32 %v3313
  %vm3320 = vmor %vm3318, %vm3319
  %v3321 = vsel %vm3320, %v3313, %v3317
  %v3322 = vand.u32 2147483647, %v3115
  %vm3323 = vcmp.eq.f32.partialorder %v3322, 8.507059e+37
  %v3324 = vand.u32 %v3115, 2147483648
  %v3325 = vor.u32 1.1754944e-38, %v3324
  %v3326 = vsel %vm3323, %v3325, %v3321
  %v3327 = vmul.f32 1.0, %v3326
  %v3328 = vrcp.pop %v3116
  %v3329 = vmul.f32 %v3116, %v3328
  %v3330 = vsub.f32 1.0, %v3329
  %v3331 = vmul.f32 %v3328, %v3330
  %v3332 = vadd.f32 %v3328, %v3331
  %vm3333 = vweird.f32 %v3116
  %vm3334 = vweird.f32 %v3328
  %vm3335 = vmor %vm3333, %vm3334
  %v3336 = vsel %vm3335, %v3328, %v3332
  %v3337 = vand.u32 2147483647, %v3116
  %vm3338 = vcmp.eq.f32.partialorder %v3337, 8.507059e+37
  %v3339 = vand.u32 %v3116, 2147483648
  %v3340 = vor.u32 1.1754944e-38, %v3339
  %v3341 = vsel %vm3338, %v3340, %v3336
  %v3342 = vmul.f32 1.0, %v3341
  %v3343 = vrcp.pop %v3117
  %v3344 = vmul.f32 %v3117, %v3343
  %v3345 = vsub.f32 1.0, %v3344
  %v3346 = vmul.f32 %v3343, %v3345
  %v3347 = vadd.f32 %v3343, %v3346
  %vm3348 = vweird.f32 %v3117
  %vm3349 = vweird.f32 %v3343
  %vm3350 = vmor %vm3348, %vm3349
  %v3351 = vsel %vm3350, %v3343, %v3347
  %v3352 = vand.u32 2147483647, %v3117
  %vm3353 = vcmp.eq.f32.partialorder %v3352, 8.507059e+37
  %v3354 = vand.u32 %v3117, 2147483648
  %v3355 = vor.u32 1.1754944e-38, %v3354
  %v3356 = vsel %vm3353, %v3355, %v3351
  %v3357 = vmul.f32 1.0, %v3356
  %vm3358 = vcmask 7168
  %3359 = vst.msk [vmem:[%s5] sm:$0xff] %vm3358, %v3132
  %3360 = vst.msk [vmem:[%s5 + $0x8] sm:$0xff] %vm3358, %v3147
  %3361 = vst.msk [vmem:[%s5 + $0x10] sm:$0xff] %vm3358, %v3162
  %3362 = vst.msk [vmem:[%s5 + $0x18] sm:$0xff] %vm3358, %v3177
  %3363 = vst.msk [vmem:[%s5 + $0x20] sm:$0xff] %vm3358, %v3192
  %3364 = vst.msk [vmem:[%s5 + $0x28] sm:$0xff] %vm3358, %v3207
  %3365 = vst.msk [vmem:[%s5 + $0x30] sm:$0xff] %vm3358, %v3222
  %3366 = vst.msk [vmem:[%s5 + $0x38] sm:$0xff] %vm3358, %v3237
  %3367 = vst.msk [vmem:[%s5 + $0x40] sm:$0xff] %vm3358, %v3252
  %3368 = vst.msk [vmem:[%s5 + $0x48] sm:$0xff] %vm3358, %v3267
  %3369 = vst.msk [vmem:[%s5 + $0x50] sm:$0xff] %vm3358, %v3282
  %3370 = vst.msk [vmem:[%s5 + $0x58] sm:$0xff] %vm3358, %v3297
  %3371 = vst.msk [vmem:[%s5 + $0x60] sm:$0xff] %vm3358, %v3312
  %3372 = vst.msk [vmem:[%s5 + $0x68] sm:$0xff] %vm3358, %v3327
  %3373 = vst.msk [vmem:[%s5 + $0x70] sm:$0xff] %vm3358, %v3342
  %3374 = vst.msk [vmem:[%s5 + $0x78] sm:$0xff] %vm3358, %v3357
  // Predicated region
  $region22: #{tpu_custom_call.1} parent=0 // pred_check
    _
  $region23: #{tpu_custom_call.1} parent=0 // pred_check_branch
    %3376 = sbr.rel (0) target = $region25
  $region24: #{tpu_custom_call.1} parent=0 // pred_region
    _
  $region25: #{tpu_custom_call.1} parent=0 // pred_fallthru
    _
  // Predicated region
  $region26: #{tpu_custom_call.1} parent=0 // pred_check
    _
  $region27: #{tpu_custom_call.1} parent=0 // pred_check_branch
    %3378 = sbr.rel (0) target = $region29
  $region28: #{tpu_custom_call.1} parent=0 // pred_region
    _
  $region29: #{tpu_custom_call.1} parent=0 // pred_fallthru
    _

</llo_original>
